<compile_context>
chip_gen: v5e
topology: v5e:2x2
jax: 0.10.0
libtpu: 0.0.40
codegen_flags: <defaults>
</compile_context>

<pallas_src>
import jax
import jax.numpy as jnp
from jax import lax
from jax.experimental import pallas as pl
from jax.experimental.pallas import tpu as pltpu

EPS = 1e-5
VMEM_LIMIT_BYTES = 48 * 1024 * 1024   # safe on v5e/v6e (128 MiB) and v7x (64 MiB)
MAX_ROW_TILE = 64                     # cap on H-strip height per grid step


def _pick_row_tile(h_out: int, cap: int = MAX_ROW_TILE) -> int:
    """Largest divisor of h_out that is <= cap (row-strip height)."""
    best = 1
    for t in range(1, min(h_out, cap) + 1):
        if h_out % t == 0:
            best = t
    return best


# --------------------------- pass 1: conv + stats ----------------------------
def _conv_stats_kernel(x_ref, w_ref, y_ref, stats_ref, acc_ref):
    """Conv for one (n, row-strip) tile with kx taps packed into K, plus the
    per-tile partial sum / sum-of-squares needed for global BatchNorm stats.

    x_ref:     (1, Hp, Wp, Cin)   padded image of batch element n (revisited
                                  across the row-strip axis -> DMA'd once per n)
    w_ref:     (ks, ks*Cin, Cout) kx-packed weights
    y_ref:     (1, Ht, Wo, Cout)  pre-BN conv output tile
    stats_ref: (1, 1, 2, Cout)    [sum, sum_sq] over this tile's Ht*Wo rows
    acc_ref:   (Ht*Wo, Cout) f32  VMEM scratch accumulator
    """
    h = pl.program_id(1)
    ks = w_ref.shape[0]
    cin = x_ref.shape[3]
    ht, wo, cout = y_ref.shape[1], y_ref.shape[2], y_ref.shape[3]

    # Only the halo'd row strip of the resident image is read per grid step.
    strip = x_ref[0, pl.ds(h * ht, ht + ks - 1), :, :]        # (Ht+ks-1, Wp, Cin)

    # Pack the kx taps into the contraction dim: (Ht+ks-1, Wo, ks*Cin).
    xk = jnp.concatenate([strip[:, kx:kx + wo, :] for kx in range(ks)], axis=-1)

    # ks matmuls with K = ks*Cin, accumulated in VMEM scratch.
    # (Conv bias intentionally omitted: cancelled by the BN mean subtraction.)
    acc_ref[...] = jnp.zeros_like(acc_ref)
    for ky in range(ks):
        acc_ref[...] += jnp.dot(
            xk[ky:ky + ht].reshape(ht * wo, ks * cin), w_ref[ky],
            preferred_element_type=jnp.float32)
    acc = acc_ref[...]

    y_ref[...] = acc.reshape(1, ht, wo, cout)
    s1 = jnp.sum(acc, axis=0, keepdims=True)          # (1, Cout)
    s2 = jnp.sum(acc * acc, axis=0, keepdims=True)    # (1, Cout)
    stats_ref[0, 0, :, :] = jnp.concatenate([s1, s2], axis=0)


# --------------------------- pass 2: BN apply + ReLU --------------------------
def _bn_relu_kernel(y_ref, scale_ref, shift_ref, o_ref):
    # y_ref/o_ref: (1, Ht, Wo, Cout); scale/shift: (1, 1, 1, Cout)
    o_ref[...] = jnp.maximum(y_ref[...] * scale_ref[...] + shift_ref[...], 0.0)


def conv_bn_relu_block(x_nhwc, w, gamma, beta, p):
    """One UNet conv block: Conv2d(ks, pad=p) -> BatchNorm2d(train) -> ReLU."""
    n, h, wdim, cin = x_nhwc.shape
    ks = w.shape[0]
    cout = w.shape[-1]
    ho = h + 2 * p - (ks - 1)
    wo = wdim + 2 * p - (ks - 1)
    ht = _pick_row_tile(ho)
    nh = ho // ht

    # TODO(synk): the 1-pixel halo could come from the input index_map
    # (element-offset blocks / manual DMA) instead of a wrapper-side jnp.pad,
    # saving one extra HBM round-trip of the input.
    xp = jnp.pad(x_nhwc, ((0, 0), (p, p), (p, p), (0, 0)))
    hp, wp = h + 2 * p, wdim + 2 * p

    # kx taps packed into the contraction dim: (ks, ks*Cin, Cout).
    wk = w.reshape(ks, ks * cin, cout)

    cparams = pltpu.CompilerParams(
        dimension_semantics=("parallel", "parallel"),
        vmem_limit_bytes=VMEM_LIMIT_BYTES)

    # ---- pass 1: tiled conv + per-tile BN partial sums ----
    y, stats = pl.pallas_call(
        _conv_stats_kernel,
        grid=(n, nh),
        in_specs=[
            # Block index is constant across the row-strip axis: the padded
            # image of batch n is DMA'd once per n and revisited per strip.
            pl.BlockSpec((1, hp, wp, cin), lambda i, j: (i, 0, 0, 0)),
            pl.BlockSpec((ks, ks * cin, cout), lambda i, j: (0, 0, 0)),
        ],
        out_specs=[
            pl.BlockSpec((1, ht, wo, cout), lambda i, j: (i, j, 0, 0)),
            pl.BlockSpec((1, 1, 2, cout), lambda i, j: (i, j, 0, 0)),
        ],
        out_shape=[
            jax.ShapeDtypeStruct((n, ho, wo, cout), jnp.float32),
            jax.ShapeDtypeStruct((n, nh, 2, cout), jnp.float32),
        ],
        scratch_shapes=[pltpu.VMEM((ht * wo, cout), jnp.float32)],
        compiler_params=cparams,
    )(xp, wk)

    # ---- tiny per-channel reduction: global training-mode BN statistics ----
    count = n * ho * wo
    ssum = jnp.sum(stats[:, :, 0, :], axis=(0, 1))
    ssq = jnp.sum(stats[:, :, 1, :], axis=(0, 1))
    mean = ssum / count
    var = jnp.maximum(ssq / count - mean * mean, 0.0)   # biased variance
    scale = gamma * lax.rsqrt(var + EPS)
    shift = beta - mean * scale

    # ---- pass 2: tiled BN apply + ReLU (pure HBM-bandwidth) ----
    out = pl.pallas_call(
        _bn_relu_kernel,
        grid=(n, nh),
        in_specs=[
            pl.BlockSpec((1, ht, wo, cout), lambda i, j: (i, j, 0, 0)),
            pl.BlockSpec((1, 1, 1, cout), lambda i, j: (0, 0, 0, 0)),
            pl.BlockSpec((1, 1, 1, cout), lambda i, j: (0, 0, 0, 0)),
        ],
        out_specs=pl.BlockSpec((1, ht, wo, cout), lambda i, j: (i, j, 0, 0)),
        out_shape=jax.ShapeDtypeStruct((n, ho, wo, cout), jnp.float32),
        compiler_params=cparams,
    )(y, scale.reshape(1, 1, 1, -1), shift.reshape(1, 1, 1, -1))
    return out


def unet_block_forward(x_nchw, params):
    """Full UNetBlock forward. Input/Output in NCHW like PyTorch."""
    x = jnp.transpose(x_nchw, (0, 2, 3, 1))  # NCHW -> NHWC
    p1, p2 = params["block_1"], params["block_2"]
    x = conv_bn_relu_block(x, p1["w"], p1["gamma"], p1["beta"], p1["p"])
    x = conv_bn_relu_block(x, p2["w"], p2["gamma"], p2["beta"], p2["p"])
    return jnp.transpose(x, (0, 3, 1, 2))  # NHWC -> NCHW


# ---------------- pure-JAX reference (for correctness check) ----------------
def _ref_block(x_nchw, w_hwio, b, gamma, beta, p):
    w_oihw = jnp.transpose(w_hwio, (3, 2, 0, 1))
    y = lax.conv_general_dilated(
        x_nchw, w_oihw, window_strides=(1, 1),
        padding=((p, p), (p, p)),
        dimension_numbers=("NCHW", "OIHW", "NCHW"))
    y = y + b[None, :, None, None]   # bias kept in the ref to verify it cancels
    mean = jnp.mean(y, axis=(0, 2, 3), keepdims=True)
    var = jnp.mean((y - mean) ** 2, axis=(0, 2, 3), keepdims=True)
    y = (y - mean) * lax.rsqrt(var + EPS)
    y = y * gamma[None, :, None, None] + beta[None, :, None, None]
    return jnp.maximum(y, 0.0)


def _ref_forward(x_nchw, params):
    p1, p2 = params["block_1"], params["block_2"]
    y = _ref_block(x_nchw, p1["w"], p1["b"], p1["gamma"], p1["beta"], p1["p"])
    y = _ref_block(y, p2["w"], p2["b"], p2["gamma"], p2["beta"], p2["p"])
    return y


def make_params(key, in_chs, out_chs, ks=3, p=1):
    ks_list = jax.random.split(key, 8)

    def conv_block_params(kw, kb, kg, kbeta, cin, cout):
        fan_in = cin * ks * ks
        w = jax.random.normal(kw, (ks, ks, cin, cout), jnp.float32) / jnp.sqrt(fan_in)
        b = 0.1 * jax.random.normal(kb, (cout,), jnp.float32)   # used by ref only
        gamma = 1.0 + 0.1 * jax.random.normal(kg, (cout,), jnp.float32)
        beta = 0.1 * jax.random.normal(kbeta, (cout,), jnp.float32)
        return {"w": w, "b": b, "gamma": gamma, "beta": beta, "p": p}

    return {
        "block_1": conv_block_params(*ks_list[0:4], in_chs, out_chs),
        "block_2": conv_block_params(*ks_list[4:8], out_chs, out_chs),
    }


if __name__ == "__main__":
    key = jax.random.PRNGKey(0)
    k_x, k_p = jax.random.split(key)

    N, Cin, Cout, H, W = 2, 4, 8, 16, 16
    x = jax.random.normal(k_x, (N, Cin, H, W), jnp.float32)
    params = make_params(k_p, Cin, Cout, ks=3, p=1)

    out = jax.block_until_ready(unet_block_forward(x, params))
    ref = jax.block_until_ready(_ref_forward(x, params))

    assert out.shape == (N, Cout, H, W), out.shape
    assert jnp.allclose(out, ref, atol=2e-3, rtol=2e-3), float(
        jnp.max(jnp.abs(out - ref)))
    print("KERNEL_OK")
</pallas_src>

<mosaic_0001>
module attributes {stable_mosaic.version = 11 : i64} {
  func.func @_conv_stats_kernel(%arg0: i32, %arg1: i32, %arg2: memref<1x18x18x4xf32, #tpu.memory_space<vmem>>, %arg3: memref<3x12x8xf32, #tpu.memory_space<vmem>>, %arg4: memref<1x16x16x8xf32, #tpu.memory_space<vmem>>, %arg5: memref<1x1x2x8xf32, #tpu.memory_space<vmem>>, %arg6: memref<256x8xf32, #tpu.memory_space<vmem>>) attributes {dimension_semantics = [#tpu.dimension_semantics<parallel>, #tpu.dimension_semantics<parallel>], iteration_bounds = array<i64: 2, 1>, scalar_prefetch = 0 : i64, scratch_operands = 1 : i64, tpu.core_type = #tpu.core_type<tc>, window_params = [{transform_indices = @transform_0, window_bounds = array<i64: 1, 18, 18, 4>}, {pipeline_mode = #tpu.pipeline_mode<synchronous>, transform_indices = @transform_1, window_bounds = array<i64: 3, 12, 8>}, {transform_indices = @transform_2, window_bounds = array<i64: 1, 16, 16, 8>}, {transform_indices = @transform_3, window_bounds = array<i64: 1, 1, 2, 8>}]} {
    %c16_i32 = arith.constant 16 : i32
    %0 = arith.muli %arg1, %c16_i32 : i32
    %c0 = arith.constant 0 : index
    %1 = arith.index_cast %0 : i32 to index
    %c0_0 = arith.constant 0 : index
    %c0_1 = arith.constant 0 : index
    %2 = vector.load %arg2[%c0, %1, %c0_0, %c0_1] : memref<1x18x18x4xf32, #tpu.memory_space<vmem>>, vector<1x18x18x4xf32>
    %3 = vector.shape_cast %2 : vector<1x18x18x4xf32> to vector<18x18x4xf32>
    %4 = vector.extract_strided_slice %3 {offsets = [0, 0, 0], sizes = [18, 16, 4], strides = [1, 1, 1]} : vector<18x18x4xf32> to vector<18x16x4xf32>
    %5 = vector.extract_strided_slice %3 {offsets = [0, 1, 0], sizes = [18, 16, 4], strides = [1, 1, 1]} : vector<18x18x4xf32> to vector<18x16x4xf32>
    %6 = vector.extract_strided_slice %3 {offsets = [0, 2, 0], sizes = [18, 16, 4], strides = [1, 1, 1]} : vector<18x18x4xf32> to vector<18x16x4xf32>
    %7 = tpu.concatenate %4, %5, %6 in 2 : vector<18x16x4xf32>, vector<18x16x4xf32>, vector<18x16x4xf32> -> vector<18x16x12xf32>
    %cst = arith.constant 0.000000e+00 : f32
    %8 = vector.broadcast %cst : f32 to vector<256x8xf32>
    %c0_2 = arith.constant 0 : index
    %c0_3 = arith.constant 0 : index
    %9 = vector.load %arg6[%c0_2, %c0_3] : memref<256x8xf32, #tpu.memory_space<vmem>>, vector<256x8xf32>
    tpu.vector_store %arg6[%c0_2, %c0_3], %8 {strides = array<i32>} : memref<256x8xf32, #tpu.memory_space<vmem>>, vector<256x8xf32>,
    %c0_4 = arith.constant 0 : index
    %c0_5 = arith.constant 0 : index
    %10 = vector.load %arg6[%c0_4, %c0_5] : memref<256x8xf32, #tpu.memory_space<vmem>>, vector<256x8xf32>
    %11 = vector.extract_strided_slice %7 {offsets = [0, 0, 0], sizes = [16, 16, 12], strides = [1, 1, 1]} : vector<18x16x12xf32> to vector<16x16x12xf32>
    %12 = vector.shape_cast %11 : vector<16x16x12xf32> to vector<256x12xf32>
    %c0_6 = arith.constant 0 : index
    %c0_7 = arith.constant 0 : index
    %c0_8 = arith.constant 0 : index
    %13 = vector.load %arg3[%c0_6, %c0_7, %c0_8] : memref<3x12x8xf32, #tpu.memory_space<vmem>>, vector<1x12x8xf32>
    %14 = vector.shape_cast %13 : vector<1x12x8xf32> to vector<12x8xf32>
    %cst_9 = arith.constant dense<0.000000e+00> : vector<256x8xf32>
    %15 = tpu.matmul %12, %14, %cst_9 {dimension_numbers = #tpu.dot_dimension_numbers<[1], [0], [0], [1], [0, 0, 1, 1], [], []>} : vector<256x12xf32>, vector<12x8xf32>, vector<256x8xf32> -> vector<256x8xf32>
    %16 = arith.addf %10, %15 : vector<256x8xf32>
    %c0_10 = arith.constant 0 : index
    %c0_11 = arith.constant 0 : index
    %17 = vector.load %arg6[%c0_10, %c0_11] : memref<256x8xf32, #tpu.memory_space<vmem>>, vector<256x8xf32>
    tpu.vector_store %arg6[%c0_10, %c0_11], %16 {strides = array<i32>} : memref<256x8xf32, #tpu.memory_space<vmem>>, vector<256x8xf32>,
    %c0_12 = arith.constant 0 : index
    %c0_13 = arith.constant 0 : index
    %18 = vector.load %arg6[%c0_12, %c0_13] : memref<256x8xf32, #tpu.memory_space<vmem>>, vector<256x8xf32>
    %19 = vector.extract_strided_slice %7 {offsets = [1, 0, 0], sizes = [16, 16, 12], strides = [1, 1, 1]} : vector<18x16x12xf32> to vector<16x16x12xf32>
    %20 = vector.shape_cast %19 : vector<16x16x12xf32> to vector<256x12xf32>
    %c1 = arith.constant 1 : index
    %c0_14 = arith.constant 0 : index
    %c0_15 = arith.constant 0 : index
    %21 = vector.load %arg3[%c1, %c0_14, %c0_15] : memref<3x12x8xf32, #tpu.memory_space<vmem>>, vector<1x12x8xf32>
    %22 = vector.shape_cast %21 : vector<1x12x8xf32> to vector<12x8xf32>
    %cst_16 = arith.constant dense<0.000000e+00> : vector<256x8xf32>
    %23 = tpu.matmul %20, %22, %cst_16 {dimension_numbers = #tpu.dot_dimension_numbers<[1], [0], [0], [1], [0, 0, 1, 1], [], []>} : vector<256x12xf32>, vector<12x8xf32>, vector<256x8xf32> -> vector<256x8xf32>
    %24 = arith.addf %18, %23 : vector<256x8xf32>
    %c0_17 = arith.constant 0 : index
    %c0_18 = arith.constant 0 : index
    %25 = vector.load %arg6[%c0_17, %c0_18] : memref<256x8xf32, #tpu.memory_space<vmem>>, vector<256x8xf32>
    tpu.vector_store %arg6[%c0_17, %c0_18], %24 {strides = array<i32>} : memref<256x8xf32, #tpu.memory_space<vmem>>, vector<256x8xf32>,
    %c0_19 = arith.constant 0 : index
    %c0_20 = arith.constant 0 : index
    %26 = vector.load %arg6[%c0_19, %c0_20] : memref<256x8xf32, #tpu.memory_space<vmem>>, vector<256x8xf32>
    %27 = vector.extract_strided_slice %7 {offsets = [2, 0, 0], sizes = [16, 16, 12], strides = [1, 1, 1]} : vector<18x16x12xf32> to vector<16x16x12xf32>
    %28 = vector.shape_cast %27 : vector<16x16x12xf32> to vector<256x12xf32>
    %c2 = arith.constant 2 : index
    %c0_21 = arith.constant 0 : index
    %c0_22 = arith.constant 0 : index
    %29 = vector.load %arg3[%c2, %c0_21, %c0_22] : memref<3x12x8xf32, #tpu.memory_space<vmem>>, vector<1x12x8xf32>
    %30 = vector.shape_cast %29 : vector<1x12x8xf32> to vector<12x8xf32>
    %cst_23 = arith.constant dense<0.000000e+00> : vector<256x8xf32>
    %31 = tpu.matmul %28, %30, %cst_23 {dimension_numbers = #tpu.dot_dimension_numbers<[1], [0], [0], [1], [0, 0, 1, 1], [], []>} : vector<256x12xf32>, vector<12x8xf32>, vector<256x8xf32> -> vector<256x8xf32>
    %32 = arith.addf %26, %31 : vector<256x8xf32>
    %c0_24 = arith.constant 0 : index
    %c0_25 = arith.constant 0 : index
    %33 = vector.load %arg6[%c0_24, %c0_25] : memref<256x8xf32, #tpu.memory_space<vmem>>, vector<256x8xf32>
    tpu.vector_store %arg6[%c0_24, %c0_25], %32 {strides = array<i32>} : memref<256x8xf32, #tpu.memory_space<vmem>>, vector<256x8xf32>,
    %c0_26 = arith.constant 0 : index
    %c0_27 = arith.constant 0 : index
    %34 = vector.load %arg6[%c0_26, %c0_27] : memref<256x8xf32, #tpu.memory_space<vmem>>, vector<256x8xf32>
    %35 = vector.shape_cast %34 : vector<256x8xf32> to vector<1x16x16x8xf32>
    %c0_28 = arith.constant 0 : index
    %c0_29 = arith.constant 0 : index
    %c0_30 = arith.constant 0 : index
    %c0_31 = arith.constant 0 : index
    %36 = vector.load %arg4[%c0_28, %c0_29, %c0_30, %c0_31] : memref<1x16x16x8xf32, #tpu.memory_space<vmem>>, vector<1x16x16x8xf32>
    tpu.vector_store %arg4[%c0_28, %c0_29, %c0_30, %c0_31], %35 {strides = array<i32>} : memref<1x16x16x8xf32, #tpu.memory_space<vmem>>, vector<1x16x16x8xf32>,
    %cst_32 = arith.constant dense<0.000000e+00> : vector<8xf32>
    %37 = vector.multi_reduction <add>, %34, %cst_32 [0] : vector<256x8xf32> to vector<8xf32>
    %38 = vector.shape_cast %37 : vector<8xf32> to vector<1x8xf32>
    %39 = arith.mulf %34, %34 : vector<256x8xf32>
    %cst_33 = arith.constant dense<0.000000e+00> : vector<8xf32>
    %40 = vector.multi_reduction <add>, %39, %cst_33 [0] : vector<256x8xf32> to vector<8xf32>
    %41 = vector.shape_cast %40 : vector<8xf32> to vector<1x8xf32>
    %42 = tpu.concatenate %38, %41 in 0 : vector<1x8xf32>, vector<1x8xf32> -> vector<2x8xf32>
    %c0_34 = arith.constant 0 : index
    %c0_35 = arith.constant 0 : index
    %c0_36 = arith.constant 0 : index
    %c0_37 = arith.constant 0 : index
    %43 = vector.load %arg5[%c0_34, %c0_35, %c0_36, %c0_37] : memref<1x1x2x8xf32, #tpu.memory_space<vmem>>, vector<1x1x2x8xf32>
    %44 = vector.shape_cast %43 : vector<1x1x2x8xf32> to vector<2x8xf32>
    %45 = vector.shape_cast %42 : vector<2x8xf32> to vector<1x1x2x8xf32>
    tpu.vector_store %arg5[%c0_34, %c0_35, %c0_36, %c0_37], %45 {strides = array<i32>} : memref<1x1x2x8xf32, #tpu.memory_space<vmem>>, vector<1x1x2x8xf32>,
    return
  }
  func.func @transform_0(%arg0: i32, %arg1: i32) -> (i32, i32, i32, i32) {
    %c0_i32 = arith.constant 0 : i32
    %c0_i32_0 = arith.constant 0 : i32
    %c0_i32_1 = arith.constant 0 : i32
    %c0_i32_2 = arith.constant 0 : i32
    return %arg0, %c0_i32, %c0_i32_0, %c0_i32_1 : i32, i32, i32, i32
  }
  func.func @transform_1(%arg0: i32, %arg1: i32) -> (i32, i32, i32) {
    %c0_i32 = arith.constant 0 : i32
    %c0_i32_0 = arith.constant 0 : i32
    %c0_i32_1 = arith.constant 0 : i32
    %c0_i32_2 = arith.constant 0 : i32
    return %c0_i32, %c0_i32_0, %c0_i32_1 : i32, i32, i32
  }
  func.func @transform_2(%arg0: i32, %arg1: i32) -> (i32, i32, i32, i32) {
    %c0_i32 = arith.constant 0 : i32
    %c0_i32_0 = arith.constant 0 : i32
    %c0_i32_1 = arith.constant 0 : i32
    return %arg0, %arg1, %c0_i32, %c0_i32_0 : i32, i32, i32, i32
  }
  func.func @transform_3(%arg0: i32, %arg1: i32) -> (i32, i32, i32, i32) {
    %c0_i32 = arith.constant 0 : i32
    %c0_i32_0 = arith.constant 0 : i32
    %c0_i32_1 = arith.constant 0 : i32
    return %arg0, %arg1, %c0_i32, %c0_i32_0 : i32, i32, i32, i32
  }
}

</mosaic_0001>

<llo_original>
// kernel: tpu_custom_call.1
$region0: #{tpu_custom_call.1}
  #allocation0 [shape = 'u32[]', space=smem, size = 0x4, offset = 0x4, fixed_abs, tag = 'smem constant byte address 0x4 - core index']
  #allocation1 [shape = 'u32[72,128]{1,0:T(1,128)}', space=vmem, size = 0x9000, scoped, tag = 'internal scratch']
  #allocation2 [shape = 'f32[256,8]{1,0:T(8,128)}', space=vmem, size = 0x20000, scoped, tag = 'scratch operand']
  %s0 = inlined_call_operand.vmem [shape: f32[2,18,18,4], index: 0, kind: input, shape index: {}]
  %s1 = inlined_call_operand.vmem [shape: f32[3,12,8], index: 1, kind: input, shape index: {}]
  %s2 = inlined_call_operand.vmem [shape: f32[2,16,16,8], index: 2, kind: output, shape index: {0}]
  %s3 = inlined_call_operand.hbm [shape: f32[2,1,2,8], index: 3, kind: output, shape index: {1}]
  %4 = xla_tuple %s2, %s3
  %s5 = sld [smem:[#allocation0]]
  $region49: #{tpu_custom_call.1} parent=0
    _
  %s7 = ssub.s32 1, %s5
  %s8 = scalar_select 0, %s7, %s5
  $region1: #{tpu_custom_call.1} parent=0
    #allocation3 [shape = 'u8[2048]{0}', space=vmem, size = 0x800, scoped, tag = 'output window, operand 1']
    #allocation4 [shape = 's32[2]{0}', space=sflag, size = 0x8, scoped, tag = 'scoped memory for tpu_custom_call.1']
    %9 = vsyncpa [#allocation4], 0
    %s10 = scalar_lea.sflag [#allocation4], 1
    %11 = vsyncpa %s10, 0
    loop: start=0, step=1, limit=4
    $region2: #{tpu_custom_call.1} parent=1 // loop_pre_header
      _
    $region3: #{tpu_custom_call.1} parent=1 // loop_header
      %s13 = sphi 0, %s17
      %p14 = scmp.ge.s32.totalorder %s13, 4
      %s20 = sphi 0, %s32
      %s21 = sphi 0, %s28
      %s22 = sphi 0, %s20
      %s23 = sphi 0, %s21
      %s24 = sphi 0, %s22
      %s25 = sphi 0, %s23
      %s35 = sphi 0, %s37
      %s38 = sphi 0, %s35
      %s39 = sphi 0, %s38
      %s55 = sphi 0, %s39
      %s59 = sphi 0, %s59
      %s61 = sphi 0, %s59
      %s62 = sphi 0, %s61
      %s76 = sphi 0, %s62
      %s84 = sphi 0, %s86
      %s87 = sphi 0, %s84
      %s88 = sphi 0, %s87
      %s104 = sphi 0, %s88
      %s112 = sphi 0, %s114
      %s115 = sphi 0, %s112
      %s116 = sphi 0, %s115
      %s132 = sphi 0, %s116
    $region4: #{tpu_custom_call.1} parent=1 // loop_header_branch
      %16 = sbr.rel (%p14) target = $region8
    $region5: #{tpu_custom_call.1} parent=1 // loop_body
      %s18 = ssub.s32 %s13, 1
      %s19 = ssub.s32 %s13, 2
      %s26 = sadd.s32 1, %s21
      %p27 = scmp.ge.s32.totalorder %s26, 1
      %s28 = scalar_select %p27, 0, %s26
      %s29 = sadd.s32 1, %s20
      %s30 = scalar_select %p27, %s29, %s20
      %p31 = scmp.ge.s32.totalorder %s30, 2
      %s32 = scalar_select %p31, 0, %s30
      %s33 = ssub.s32 %s20, %s32
      %p34 = scmp.eq.s32.totalorder %s33, 0
      %s36 = sadd.s32 %s35, 1
      %s37 = scalar_select %p34, %s35, %s36
      %p40 = pneg %p34
      %p41 = scmp.eq.s32.totalorder %s13, 1
      %p42 = por %p40, %p41
      %p43 = scmp.ne.s32.totalorder %s35, %s38
      %p44 = scmp.eq.s32.totalorder %s13, 0
      %p45 = por %p43, %p44
      %p46 = scmp.ne.s32.totalorder %s35, %s38
      %p47 = scmp.eq.s32.totalorder %s18, 1
      %p48 = por %p46, %p47
      %p49 = scmp.ne.s32.totalorder %s38, %s39
      %p50 = scmp.eq.s32.totalorder %s18, 0
      %p51 = por %p49, %p50
      %p52 = scmp.ne.s32.totalorder %s38, %s39
      %p53 = scmp.eq.s32.totalorder %s19, 1
      %p54 = por %p52, %p53
      %p56 = scmp.ne.s32.totalorder %s39, %s55
      %p57 = scmp.eq.s32.totalorder %s19, 0
      %p58 = por %p56, %p57
      %s60 = sadd.s32 %s59, 1
      %p63 = scmp.eq.s32.totalorder %s13, 1
      %p64 = scmp.ne.s32.totalorder %s59, %s61
      %p65 = scmp.eq.s32.totalorder %s13, 0
      %p66 = por %p64, %p65
      %p67 = scmp.ne.s32.totalorder %s59, %s61
      %p68 = scmp.eq.s32.totalorder %s18, 1
      %p69 = por %p67, %p68
      %p70 = scmp.ne.s32.totalorder %s61, %s62
      %p71 = scmp.eq.s32.totalorder %s18, 0
      %p72 = por %p70, %p71
      %p73 = scmp.ne.s32.totalorder %s61, %s62
      %p74 = scmp.eq.s32.totalorder %s19, 1
      %p75 = por %p73, %p74
      %p77 = scmp.ne.s32.totalorder %s62, %s76
      %p78 = scmp.eq.s32.totalorder %s19, 0
      %p79 = por %p77, %p78
      %s80 = ssub.s32 %s20, %s32
      %s81 = ssub.s32 %s21, %s28
      %s82 = sor.u32 %s80, %s81
      %p83 = scmp.eq.s32.totalorder %s82, 0
      %s85 = sadd.s32 %s84, 1
      %s86 = scalar_select %p83, %s84, %s85
      %p89 = pneg %p83
      %p90 = scmp.eq.s32.totalorder %s13, 1
      %p91 = por %p89, %p90
      %p92 = scmp.ne.s32.totalorder %s84, %s87
      %p93 = scmp.eq.s32.totalorder %s13, 0
      %p94 = por %p92, %p93
      %p95 = scmp.ne.s32.totalorder %s84, %s87
      %p96 = scmp.eq.s32.totalorder %s18, 1
      %p97 = por %p95, %p96
      %p98 = scmp.ne.s32.totalorder %s87, %s88
      %p99 = scmp.eq.s32.totalorder %s18, 0
      %p100 = por %p98, %p99
      %p101 = scmp.ne.s32.totalorder %s87, %s88
      %p102 = scmp.eq.s32.totalorder %s19, 1
      %p103 = por %p101, %p102
      %p105 = scmp.ne.s32.totalorder %s88, %s104
      %p106 = scmp.eq.s32.totalorder %s19, 0
      %p107 = por %p105, %p106
      %s108 = ssub.s32 %s20, %s32
      %s109 = ssub.s32 %s21, %s28
      %s110 = sor.u32 %s108, %s109
      %p111 = scmp.eq.s32.totalorder %s110, 0
      %s113 = sadd.s32 %s112, 1
      %s114 = scalar_select %p111, %s112, %s113
      %p117 = pneg %p111
      %p118 = scmp.eq.s32.totalorder %s13, 1
      %p119 = por %p117, %p118
      %p120 = scmp.ne.s32.totalorder %s112, %s115
      %p121 = scmp.eq.s32.totalorder %s13, 0
      %p122 = por %p120, %p121
      %p123 = scmp.ne.s32.totalorder %s112, %s115
      %p124 = scmp.eq.s32.totalorder %s18, 1
      %p125 = por %p123, %p124
      %p126 = scmp.ne.s32.totalorder %s115, %s116
      %p127 = scmp.eq.s32.totalorder %s18, 0
      %p128 = por %p126, %p127
      %p129 = scmp.ne.s32.totalorder %s115, %s116
      %p130 = scmp.eq.s32.totalorder %s19, 1
      %p131 = por %p129, %p130
      %p133 = scmp.ne.s32.totalorder %s116, %s132
      %p134 = scmp.eq.s32.totalorder %s19, 0
      %p135 = por %p133, %p134
      %p136 = scmp.le.s32.totalorder 1, %s13
      %p137 = scmp.lt.s32.totalorder %s13, 3
      %p138 = pnand %p136, %p137
      %p139 = pneg %p138
      // Predicated region
      $region9: #{tpu_custom_call.1} parent=5 // pred_check
        _
      $region10: #{tpu_custom_call.1} parent=5 // pred_check_branch
        %141 = sbr.rel (%p138) target = $region12
      $region11: #{tpu_custom_call.1} parent=5 // pred_region
        %s142 = ssub.s32 %s13, 1
        // Predicated region
        $region13: #{tpu_custom_call.1} parent=11 // pred_check
          %p143 = pneg %p72
        $region14: #{tpu_custom_call.1} parent=11 // pred_check_branch
          %145 = sbr.rel (%p143) target = $region16
        $region15: #{tpu_custom_call.1} parent=11 // pred_region
          _
        $region16: #{tpu_custom_call.1} parent=11 // pred_fallthru
          _
      $region12: #{tpu_custom_call.1} parent=5 // pred_fallthru
        _
      %p146 = scmp.lt.s32.totalorder %s13, 2
      // Predicated region
      $region17: #{tpu_custom_call.1} parent=5 // pred_check
        %p147 = pneg %p146
      $region18: #{tpu_custom_call.1} parent=5 // pred_check_branch
        %149 = sbr.rel (%p147) target = $region20
      $region19: #{tpu_custom_call.1} parent=5 // pred_region
        // Predicated region
        $region21: #{tpu_custom_call.1} parent=19 // pred_check
          %p150 = pneg %p45
        $region22: #{tpu_custom_call.1} parent=19 // pred_check_branch
          %152 = sbr.rel (%p150) target = $region24
        $region23: #{tpu_custom_call.1} parent=19 // pred_region
          %p153 = scmp.lt.s32.totalorder %s20, 1
          %s154 = scalar_select %p153, %s20, 1
          %s155 = smul.addr %s154, 54
          %s156 = smul.addr %s155, 8
          %s157 = scalar_lea.vmem %s0, %s156
        $region24: #{tpu_custom_call.1} parent=19 // pred_fallthru
          _
      $region20: #{tpu_custom_call.1} parent=5 // pred_fallthru
        _
      %p158 = scmp.le.s32.totalorder 1, %s13
      %p159 = scmp.lt.s32.totalorder %s13, 3
      %p160 = pnand %p158, %p159
      %p161 = pneg %p160
      // Predicated region
      $region25: #{tpu_custom_call.1} parent=5 // pred_check
        _
      $region26: #{tpu_custom_call.1} parent=5 // pred_check_branch
        %163 = sbr.rel (%p160) target = $region28
      $region27: #{tpu_custom_call.1} parent=5 // pred_region
        %s164 = ssub.s32 %s13, 1
        %p165 = scmp.lt.s32.totalorder %s22, 1
        %s166 = scalar_select %p165, %s22, 1
        %s167 = smul.addr %s166, 54
        %s168 = smul.addr %s167, 8
        %s169 = scalar_lea.vmem %s0, %s168
        %p170 = pneg %p51
        %p171 = pneg %p48
        %p172 = pneg %p72
        %p173 = pneg %p69
        %p174 = pneg %p100
        %p175 = pneg %p97
        %s176 = smul.u32 16, %s23
        %p177 = scmp.lt.s32.totalorder %s22, 1
        %s178 = scalar_select %p177, %s22, 1
        %p179 = scmp.lt.s32.totalorder %s176, 15
        %s180 = scalar_select %p179, %s176, 15
        %s181 = smul.addr %s180, 2
        %s182 = smul.addr %s178, 32
        %s183 = sadd.s32 %s181, %s182
        %s184 = smul.addr %s183, 8
        %s185 = scalar_lea.vmem %s2, %s184
        %p186 = pneg %p128
        %p187 = pneg %p125
        %s188 = sand.u32 %s115, 1
        %s189 = scalar_lea.sflag [#allocation4], %s188
        %s190 = sand.u32 %s115, 1
        %s191 = smul.addr %s190, 2
        %s192 = scalar_lea.vmem [#allocation3], %s191
        %p193 = scmp.lt.s32.totalorder %s22, 1
        %s194 = scalar_select %p193, %s22, 1
        %s195 = smul.addr %s194, 54
        %s196 = smul.addr %s195, 8
        %s197 = scalar_lea.vmem %s0, %s196
        %s198 = smul.u32 16, %s23
        %p199 = scmp.lt.s32.totalorder %s22, 1
        %s200 = scalar_select %p199, %s22, 1
        %p201 = scmp.lt.s32.totalorder %s198, 15
        %s202 = scalar_select %p201, %s198, 15
        %s203 = smul.addr %s202, 2
        %s204 = smul.addr %s200, 32
        %s205 = sadd.s32 %s203, %s204
        %s206 = smul.addr %s205, 8
        %s207 = scalar_lea.vmem %s2, %s206
        %s208 = smul.u32 16, %s23
        %s209 = smul.u32 %s23, 16
        %s210 = smul.u32 %s209, 24
        %s211 = scalar_lea.vmem %s197, %s210
        %v212 = vld [vmem:[%s211] sm:$0xff]
        %v213 = vld [vmem:[%s211 + $0x8] sm:$0xff]
        %v214 = vld [vmem:[%s211 + $0x10] sm:$0x3]
        %v215 = vld [vmem:[%s211 + $0x18] sm:$0xff]
        %v216 = vld [vmem:[%s211 + $0x20] sm:$0xff]
        %v217 = vld [vmem:[%s211 + $0x28] sm:$0x3]
        %v218 = vld [vmem:[%s211 + $0x30] sm:$0xff]
        %v219 = vld [vmem:[%s211 + $0x38] sm:$0xff]
        %v220 = vld [vmem:[%s211 + $0x40] sm:$0x3]
        %v221 = vld [vmem:[%s211 + $0x48] sm:$0xff]
        %v222 = vld [vmem:[%s211 + $0x50] sm:$0xff]
        %v223 = vld [vmem:[%s211 + $0x58] sm:$0x3]
        %v224 = vld [vmem:[%s211 + $0x60] sm:$0xff]
        %v225 = vld [vmem:[%s211 + $0x68] sm:$0xff]
        %v226 = vld [vmem:[%s211 + $0x70] sm:$0x3]
        %v227 = vld [vmem:[%s211 + $0x78] sm:$0xff]
        %v228 = vld [vmem:[%s211 + $0x80] sm:$0xff]
        %v229 = vld [vmem:[%s211 + $0x88] sm:$0x3]
        %v230 = vld [vmem:[%s211 + $0x90] sm:$0xff]
        %v231 = vld [vmem:[%s211 + $0x98] sm:$0xff]
        %v232 = vld [vmem:[%s211 + $0xa0] sm:$0x3]
        %v233 = vld [vmem:[%s211 + $0xa8] sm:$0xff]
        %v234 = vld [vmem:[%s211 + $0xb0] sm:$0xff]
        %v235 = vld [vmem:[%s211 + $0xb8] sm:$0x3]
        %v236 = vld [vmem:[%s211 + $0xc0] sm:$0xff]
        %v237 = vld [vmem:[%s211 + $0xc8] sm:$0xff]
        %v238 = vld [vmem:[%s211 + $0xd0] sm:$0x3]
        %v239 = vld [vmem:[%s211 + $0xd8] sm:$0xff]
        %v240 = vld [vmem:[%s211 + $0xe0] sm:$0xff]
        %v241 = vld [vmem:[%s211 + $0xe8] sm:$0x3]
        %v242 = vld [vmem:[%s211 + $0xf0] sm:$0xff]
        %v243 = vld [vmem:[%s211 + $0xf8] sm:$0xff]
        %v244 = vld [vmem:[%s211 + $0x100] sm:$0x3]
        %v245 = vld [vmem:[%s211 + $0x108] sm:$0xff]
        %v246 = vld [vmem:[%s211 + $0x110] sm:$0xff]
        %v247 = vld [vmem:[%s211 + $0x118] sm:$0x3]
        %v248 = vld [vmem:[%s211 + $0x120] sm:$0xff]
        %v249 = vld [vmem:[%s211 + $0x128] sm:$0xff]
        %v250 = vld [vmem:[%s211 + $0x130] sm:$0x3]
        %v251 = vld [vmem:[%s211 + $0x138] sm:$0xff]
        %v252 = vld [vmem:[%s211 + $0x140] sm:$0xff]
        %v253 = vld [vmem:[%s211 + $0x148] sm:$0x3]
        %v254 = vld [vmem:[%s211 + $0x150] sm:$0xff]
        %v255 = vld [vmem:[%s211 + $0x158] sm:$0xff]
        %v256 = vld [vmem:[%s211 + $0x160] sm:$0x3]
        %v257 = vld [vmem:[%s211 + $0x168] sm:$0xff]
        %v258 = vld [vmem:[%s211 + $0x170] sm:$0xff]
        %v259 = vld [vmem:[%s211 + $0x178] sm:$0x3]
        %v260 = vld [vmem:[%s211 + $0x180] sm:$0xff]
        %v261 = vld [vmem:[%s211 + $0x188] sm:$0xff]
        %v262 = vld [vmem:[%s211 + $0x190] sm:$0x3]
        %v263 = vld [vmem:[%s211 + $0x198] sm:$0xff]
        %v264 = vld [vmem:[%s211 + $0x1a0] sm:$0xff]
        %v265 = vld [vmem:[%s211 + $0x1a8] sm:$0x3]
        %vm320 = vcmask 1046528
        %v321 = vrot.slane %v212, 1
        %v322 = vrot.slane %v213, 1
        %v323 = vsel %vm320, %v321, %v322
        %v324 = vrot.slane %v214, 1
        %v325 = vsel %vm320, %v322, %v324
        %v326 = vrot.slane %v215, 1
        %v327 = vrot.slane %v216, 1
        %v328 = vsel %vm320, %v326, %v327
        %v329 = vrot.slane %v217, 1
        %v330 = vsel %vm320, %v327, %v329
        %v331 = vrot.slane %v218, 1
        %v332 = vrot.slane %v219, 1
        %v333 = vsel %vm320, %v331, %v332
        %v334 = vrot.slane %v220, 1
        %v335 = vsel %vm320, %v332, %v334
        %v336 = vrot.slane %v221, 1
        %v337 = vrot.slane %v222, 1
        %v338 = vsel %vm320, %v336, %v337
        %v339 = vrot.slane %v223, 1
        %v340 = vsel %vm320, %v337, %v339
        %v341 = vrot.slane %v224, 1
        %v342 = vrot.slane %v225, 1
        %v343 = vsel %vm320, %v341, %v342
        %v344 = vrot.slane %v226, 1
        %v345 = vsel %vm320, %v342, %v344
        %v346 = vrot.slane %v227, 1
        %v347 = vrot.slane %v228, 1
        %v348 = vsel %vm320, %v346, %v347
        %v349 = vrot.slane %v229, 1
        %v350 = vsel %vm320, %v347, %v349
        %v351 = vrot.slane %v230, 1
        %v352 = vrot.slane %v231, 1
        %v353 = vsel %vm320, %v351, %v352
        %v354 = vrot.slane %v232, 1
        %v355 = vsel %vm320, %v352, %v354
        %v356 = vrot.slane %v233, 1
        %v357 = vrot.slane %v234, 1
        %v358 = vsel %vm320, %v356, %v357
        %v359 = vrot.slane %v235, 1
        %v360 = vsel %vm320, %v357, %v359
        %v361 = vrot.slane %v236, 1
        %v362 = vrot.slane %v237, 1
        %v363 = vsel %vm320, %v361, %v362
        %v364 = vrot.slane %v238, 1
        %v365 = vsel %vm320, %v362, %v364
        %v366 = vrot.slane %v239, 1
        %v367 = vrot.slane %v240, 1
        %v368 = vsel %vm320, %v366, %v367
        %v369 = vrot.slane %v241, 1
        %v370 = vsel %vm320, %v367, %v369
        %v371 = vrot.slane %v242, 1
        %v372 = vrot.slane %v243, 1
        %v373 = vsel %vm320, %v371, %v372
        %v374 = vrot.slane %v244, 1
        %v375 = vsel %vm320, %v372, %v374
        %v376 = vrot.slane %v245, 1
        %v377 = vrot.slane %v246, 1
        %v378 = vsel %vm320, %v376, %v377
        %v379 = vrot.slane %v247, 1
        %v380 = vsel %vm320, %v377, %v379
        %v381 = vrot.slane %v248, 1
        %v382 = vrot.slane %v249, 1
        %v383 = vsel %vm320, %v381, %v382
        %v384 = vrot.slane %v250, 1
        %v385 = vsel %vm320, %v382, %v384
        %v386 = vrot.slane %v251, 1
        %v387 = vrot.slane %v252, 1
        %v388 = vsel %vm320, %v386, %v387
        %v389 = vrot.slane %v253, 1
        %v390 = vsel %vm320, %v387, %v389
        %v391 = vrot.slane %v254, 1
        %v392 = vrot.slane %v255, 1
        %v393 = vsel %vm320, %v391, %v392
        %v394 = vrot.slane %v256, 1
        %v395 = vsel %vm320, %v392, %v394
        %v396 = vrot.slane %v257, 1
        %v397 = vrot.slane %v258, 1
        %v398 = vsel %vm320, %v396, %v397
        %v399 = vrot.slane %v259, 1
        %v400 = vsel %vm320, %v397, %v399
        %v401 = vrot.slane %v260, 1
        %v402 = vrot.slane %v261, 1
        %v403 = vsel %vm320, %v401, %v402
        %v404 = vrot.slane %v262, 1
        %v405 = vsel %vm320, %v402, %v404
        %v406 = vrot.slane %v263, 1
        %v407 = vrot.slane %v264, 1
        %v408 = vsel %vm320, %v406, %v407
        %v409 = vrot.slane %v265, 1
        %v410 = vsel %vm320, %v407, %v409
        %411 = vrot.lane.b32.xlu0 %v323, 4
        %v412 = vpop.permute.xlu0 %411
        %413 = vrot.lane.b32.xlu0 %v325, 4
        %v414 = vpop.permute.xlu0 %413
        %415 = vrot.lane.b32.xlu0 %v328, 4
        %v416 = vpop.permute.xlu0 %415
        %417 = vrot.lane.b32.xlu0 %v330, 4
        %v418 = vpop.permute.xlu0 %417
        %419 = vrot.lane.b32.xlu0 %v333, 4
        %v420 = vpop.permute.xlu0 %419
        %421 = vrot.lane.b32.xlu0 %v335, 4
        %v422 = vpop.permute.xlu0 %421
        %423 = vrot.lane.b32.xlu0 %v338, 4
        %v424 = vpop.permute.xlu0 %423
        %425 = vrot.lane.b32.xlu0 %v340, 4
        %v426 = vpop.permute.xlu0 %425
        %427 = vrot.lane.b32.xlu0 %v343, 4
        %v428 = vpop.permute.xlu0 %427
        %429 = vrot.lane.b32.xlu0 %v345, 4
        %v430 = vpop.permute.xlu0 %429
        %431 = vrot.lane.b32.xlu0 %v348, 4
        %v432 = vpop.permute.xlu0 %431
        %433 = vrot.lane.b32.xlu0 %v350, 4
        %v434 = vpop.permute.xlu0 %433
        %435 = vrot.lane.b32.xlu0 %v353, 4
        %v436 = vpop.permute.xlu0 %435
        %437 = vrot.lane.b32.xlu0 %v355, 4
        %v438 = vpop.permute.xlu0 %437
        %439 = vrot.lane.b32.xlu0 %v358, 4
        %v440 = vpop.permute.xlu0 %439
        %441 = vrot.lane.b32.xlu0 %v360, 4
        %v442 = vpop.permute.xlu0 %441
        %443 = vrot.lane.b32.xlu0 %v363, 4
        %v444 = vpop.permute.xlu0 %443
        %445 = vrot.lane.b32.xlu0 %v365, 4
        %v446 = vpop.permute.xlu0 %445
        %447 = vrot.lane.b32.xlu0 %v368, 4
        %v448 = vpop.permute.xlu0 %447
        %449 = vrot.lane.b32.xlu0 %v370, 4
        %v450 = vpop.permute.xlu0 %449
        %451 = vrot.lane.b32.xlu0 %v373, 4
        %v452 = vpop.permute.xlu0 %451
        %453 = vrot.lane.b32.xlu0 %v375, 4
        %v454 = vpop.permute.xlu0 %453
        %455 = vrot.lane.b32.xlu0 %v378, 4
        %v456 = vpop.permute.xlu0 %455
        %457 = vrot.lane.b32.xlu0 %v380, 4
        %v458 = vpop.permute.xlu0 %457
        %459 = vrot.lane.b32.xlu0 %v383, 4
        %v460 = vpop.permute.xlu0 %459
        %461 = vrot.lane.b32.xlu0 %v385, 4
        %v462 = vpop.permute.xlu0 %461
        %463 = vrot.lane.b32.xlu0 %v388, 4
        %v464 = vpop.permute.xlu0 %463
        %465 = vrot.lane.b32.xlu0 %v390, 4
        %v466 = vpop.permute.xlu0 %465
        %467 = vrot.lane.b32.xlu0 %v393, 4
        %v468 = vpop.permute.xlu0 %467
        %469 = vrot.lane.b32.xlu0 %v395, 4
        %v470 = vpop.permute.xlu0 %469
        %471 = vrot.lane.b32.xlu0 %v398, 4
        %v472 = vpop.permute.xlu0 %471
        %473 = vrot.lane.b32.xlu0 %v400, 4
        %v474 = vpop.permute.xlu0 %473
        %475 = vrot.lane.b32.xlu0 %v403, 4
        %v476 = vpop.permute.xlu0 %475
        %477 = vrot.lane.b32.xlu0 %v405, 4
        %v478 = vpop.permute.xlu0 %477
        %479 = vrot.lane.b32.xlu0 %v408, 4
        %v480 = vpop.permute.xlu0 %479
        %481 = vrot.lane.b32.xlu0 %v410, 4
        %v482 = vpop.permute.xlu0 %481
        %vm519 = vcmask 1045504
        %v520 = vrot.slane %v212, 2
        %v521 = vrot.slane %v213, 2
        %v522 = vsel %vm519, %v520, %v521
        %v523 = vrot.slane %v214, 2
        %v524 = vsel %vm519, %v521, %v523
        %v525 = vrot.slane %v215, 2
        %v526 = vrot.slane %v216, 2
        %v527 = vsel %vm519, %v525, %v526
        %v528 = vrot.slane %v217, 2
        %v529 = vsel %vm519, %v526, %v528
        %v530 = vrot.slane %v218, 2
        %v531 = vrot.slane %v219, 2
        %v532 = vsel %vm519, %v530, %v531
        %v533 = vrot.slane %v220, 2
        %v534 = vsel %vm519, %v531, %v533
        %v535 = vrot.slane %v221, 2
        %v536 = vrot.slane %v222, 2
        %v537 = vsel %vm519, %v535, %v536
        %v538 = vrot.slane %v223, 2
        %v539 = vsel %vm519, %v536, %v538
        %v540 = vrot.slane %v224, 2
        %v541 = vrot.slane %v225, 2
        %v542 = vsel %vm519, %v540, %v541
        %v543 = vrot.slane %v226, 2
        %v544 = vsel %vm519, %v541, %v543
        %v545 = vrot.slane %v227, 2
        %v546 = vrot.slane %v228, 2
        %v547 = vsel %vm519, %v545, %v546
        %v548 = vrot.slane %v229, 2
        %v549 = vsel %vm519, %v546, %v548
        %v550 = vrot.slane %v230, 2
        %v551 = vrot.slane %v231, 2
        %v552 = vsel %vm519, %v550, %v551
        %v553 = vrot.slane %v232, 2
        %v554 = vsel %vm519, %v551, %v553
        %v555 = vrot.slane %v233, 2
        %v556 = vrot.slane %v234, 2
        %v557 = vsel %vm519, %v555, %v556
        %v558 = vrot.slane %v235, 2
        %v559 = vsel %vm519, %v556, %v558
        %v560 = vrot.slane %v236, 2
        %v561 = vrot.slane %v237, 2
        %v562 = vsel %vm519, %v560, %v561
        %v563 = vrot.slane %v238, 2
        %v564 = vsel %vm519, %v561, %v563
        %v565 = vrot.slane %v239, 2
        %v566 = vrot.slane %v240, 2
        %v567 = vsel %vm519, %v565, %v566
        %v568 = vrot.slane %v241, 2
        %v569 = vsel %vm519, %v566, %v568
        %v570 = vrot.slane %v242, 2
        %v571 = vrot.slane %v243, 2
        %v572 = vsel %vm519, %v570, %v571
        %v573 = vrot.slane %v244, 2
        %v574 = vsel %vm519, %v571, %v573
        %v575 = vrot.slane %v245, 2
        %v576 = vrot.slane %v246, 2
        %v577 = vsel %vm519, %v575, %v576
        %v578 = vrot.slane %v247, 2
        %v579 = vsel %vm519, %v576, %v578
        %v580 = vrot.slane %v248, 2
        %v581 = vrot.slane %v249, 2
        %v582 = vsel %vm519, %v580, %v581
        %v583 = vrot.slane %v250, 2
        %v584 = vsel %vm519, %v581, %v583
        %v585 = vrot.slane %v251, 2
        %v586 = vrot.slane %v252, 2
        %v587 = vsel %vm519, %v585, %v586
        %v588 = vrot.slane %v253, 2
        %v589 = vsel %vm519, %v586, %v588
        %v590 = vrot.slane %v254, 2
        %v591 = vrot.slane %v255, 2
        %v592 = vsel %vm519, %v590, %v591
        %v593 = vrot.slane %v256, 2
        %v594 = vsel %vm519, %v591, %v593
        %v595 = vrot.slane %v257, 2
        %v596 = vrot.slane %v258, 2
        %v597 = vsel %vm519, %v595, %v596
        %v598 = vrot.slane %v259, 2
        %v599 = vsel %vm519, %v596, %v598
        %v600 = vrot.slane %v260, 2
        %v601 = vrot.slane %v261, 2
        %v602 = vsel %vm519, %v600, %v601
        %v603 = vrot.slane %v262, 2
        %v604 = vsel %vm519, %v601, %v603
        %v605 = vrot.slane %v263, 2
        %v606 = vrot.slane %v264, 2
        %v607 = vsel %vm519, %v605, %v606
        %v608 = vrot.slane %v265, 2
        %v609 = vsel %vm519, %v606, %v608
        %610 = vrot.lane.b32.xlu0 %v522, 8
        %v611 = vpop.permute.xlu0 %610
        %612 = vrot.lane.b32.xlu0 %v524, 8
        %v613 = vpop.permute.xlu0 %612
        %614 = vrot.lane.b32.xlu0 %v527, 8
        %v615 = vpop.permute.xlu0 %614
        %616 = vrot.lane.b32.xlu0 %v529, 8
        %v617 = vpop.permute.xlu0 %616
        %618 = vrot.lane.b32.xlu0 %v532, 8
        %v619 = vpop.permute.xlu0 %618
        %620 = vrot.lane.b32.xlu0 %v534, 8
        %v621 = vpop.permute.xlu0 %620
        %622 = vrot.lane.b32.xlu0 %v537, 8
        %v623 = vpop.permute.xlu0 %622
        %624 = vrot.lane.b32.xlu0 %v539, 8
        %v625 = vpop.permute.xlu0 %624
        %626 = vrot.lane.b32.xlu0 %v542, 8
        %v627 = vpop.permute.xlu0 %626
        %628 = vrot.lane.b32.xlu0 %v544, 8
        %v629 = vpop.permute.xlu0 %628
        %630 = vrot.lane.b32.xlu0 %v547, 8
        %v631 = vpop.permute.xlu0 %630
        %632 = vrot.lane.b32.xlu0 %v549, 8
        %v633 = vpop.permute.xlu0 %632
        %634 = vrot.lane.b32.xlu0 %v552, 8
        %v635 = vpop.permute.xlu0 %634
        %636 = vrot.lane.b32.xlu0 %v554, 8
        %v637 = vpop.permute.xlu0 %636
        %638 = vrot.lane.b32.xlu0 %v557, 8
        %v639 = vpop.permute.xlu0 %638
        %640 = vrot.lane.b32.xlu0 %v559, 8
        %v641 = vpop.permute.xlu0 %640
        %642 = vrot.lane.b32.xlu0 %v562, 8
        %v643 = vpop.permute.xlu0 %642
        %644 = vrot.lane.b32.xlu0 %v564, 8
        %v645 = vpop.permute.xlu0 %644
        %646 = vrot.lane.b32.xlu0 %v567, 8
        %v647 = vpop.permute.xlu0 %646
        %648 = vrot.lane.b32.xlu0 %v569, 8
        %v649 = vpop.permute.xlu0 %648
        %650 = vrot.lane.b32.xlu0 %v572, 8
        %v651 = vpop.permute.xlu0 %650
        %652 = vrot.lane.b32.xlu0 %v574, 8
        %v653 = vpop.permute.xlu0 %652
        %654 = vrot.lane.b32.xlu0 %v577, 8
        %v655 = vpop.permute.xlu0 %654
        %656 = vrot.lane.b32.xlu0 %v579, 8
        %v657 = vpop.permute.xlu0 %656
        %658 = vrot.lane.b32.xlu0 %v582, 8
        %v659 = vpop.permute.xlu0 %658
        %660 = vrot.lane.b32.xlu0 %v584, 8
        %v661 = vpop.permute.xlu0 %660
        %662 = vrot.lane.b32.xlu0 %v587, 8
        %v663 = vpop.permute.xlu0 %662
        %664 = vrot.lane.b32.xlu0 %v589, 8
        %v665 = vpop.permute.xlu0 %664
        %666 = vrot.lane.b32.xlu0 %v592, 8
        %v667 = vpop.permute.xlu0 %666
        %668 = vrot.lane.b32.xlu0 %v594, 8
        %v669 = vpop.permute.xlu0 %668
        %670 = vrot.lane.b32.xlu0 %v597, 8
        %v671 = vpop.permute.xlu0 %670
        %672 = vrot.lane.b32.xlu0 %v599, 8
        %v673 = vpop.permute.xlu0 %672
        %674 = vrot.lane.b32.xlu0 %v602, 8
        %v675 = vpop.permute.xlu0 %674
        %676 = vrot.lane.b32.xlu0 %v604, 8
        %v677 = vpop.permute.xlu0 %676
        %678 = vrot.lane.b32.xlu0 %v607, 8
        %v679 = vpop.permute.xlu0 %678
        %680 = vrot.lane.b32.xlu0 %v609, 8
        %v681 = vpop.permute.xlu0 %680
        %vm718 = vcmask 31744
        %v719 = vsel %vm718, %v212, %v412
        %v720 = vsel %vm718, %v213, %v414
        %v721 = vsel %vm718, %v215, %v416
        %v722 = vsel %vm718, %v216, %v418
        %v723 = vsel %vm718, %v218, %v420
        %v724 = vsel %vm718, %v219, %v422
        %v725 = vsel %vm718, %v221, %v424
        %v726 = vsel %vm718, %v222, %v426
        %v727 = vsel %vm718, %v224, %v428
        %v728 = vsel %vm718, %v225, %v430
        %v729 = vsel %vm718, %v227, %v432
        %v730 = vsel %vm718, %v228, %v434
        %v731 = vsel %vm718, %v230, %v436
        %v732 = vsel %vm718, %v231, %v438
        %v733 = vsel %vm718, %v233, %v440
        %v734 = vsel %vm718, %v234, %v442
        %v735 = vsel %vm718, %v236, %v444
        %v736 = vsel %vm718, %v237, %v446
        %v737 = vsel %vm718, %v239, %v448
        %v738 = vsel %vm718, %v240, %v450
        %v739 = vsel %vm718, %v242, %v452
        %v740 = vsel %vm718, %v243, %v454
        %v741 = vsel %vm718, %v245, %v456
        %v742 = vsel %vm718, %v246, %v458
        %v743 = vsel %vm718, %v248, %v460
        %v744 = vsel %vm718, %v249, %v462
        %v745 = vsel %vm718, %v251, %v464
        %v746 = vsel %vm718, %v252, %v466
        %v747 = vsel %vm718, %v254, %v468
        %v748 = vsel %vm718, %v255, %v470
        %v749 = vsel %vm718, %v257, %v472
        %v750 = vsel %vm718, %v258, %v474
        %v751 = vsel %vm718, %v260, %v476
        %v752 = vsel %vm718, %v261, %v478
        %v753 = vsel %vm718, %v263, %v480
        %v754 = vsel %vm718, %v264, %v482
        %vm755 = vcmask 64512
        %v756 = vsel %vm755, %v719, %v611
        %v757 = vsel %vm755, %v720, %v613
        %v758 = vsel %vm755, %v721, %v615
        %v759 = vsel %vm755, %v722, %v617
        %v760 = vsel %vm755, %v723, %v619
        %v761 = vsel %vm755, %v724, %v621
        %v762 = vsel %vm755, %v725, %v623
        %v763 = vsel %vm755, %v726, %v625
        %v764 = vsel %vm755, %v727, %v627
        %v765 = vsel %vm755, %v728, %v629
        %v766 = vsel %vm755, %v729, %v631
        %v767 = vsel %vm755, %v730, %v633
        %v768 = vsel %vm755, %v731, %v635
        %v769 = vsel %vm755, %v732, %v637
        %v770 = vsel %vm755, %v733, %v639
        %v771 = vsel %vm755, %v734, %v641
        %v772 = vsel %vm755, %v735, %v643
        %v773 = vsel %vm755, %v736, %v645
        %v774 = vsel %vm755, %v737, %v647
        %v775 = vsel %vm755, %v738, %v649
        %v776 = vsel %vm755, %v739, %v651
        %v777 = vsel %vm755, %v740, %v653
        %v778 = vsel %vm755, %v741, %v655
        %v779 = vsel %vm755, %v742, %v657
        %v780 = vsel %vm755, %v743, %v659
        %v781 = vsel %vm755, %v744, %v661
        %v782 = vsel %vm755, %v745, %v663
        %v783 = vsel %vm755, %v746, %v665
        %v784 = vsel %vm755, %v747, %v667
        %v785 = vsel %vm755, %v748, %v669
        %v786 = vsel %vm755, %v749, %v671
        %v787 = vsel %vm755, %v750, %v673
        %v788 = vsel %vm755, %v751, %v675
        %v789 = vsel %vm755, %v752, %v677
        %v790 = vsel %vm755, %v753, %v679
        %v791 = vsel %vm755, %v754, %v681
        %792 = vst.msk [vmem:[#allocation2] sm:$0xff] %vm755, 0.0
        %793 = vst.msk [vmem:[#allocation2 + $0x8] sm:$0xff] %vm755, 0.0
        %794 = vst.msk [vmem:[#allocation2 + $0x10] sm:$0xff] %vm755, 0.0
        %795 = vst.msk [vmem:[#allocation2 + $0x18] sm:$0xff] %vm755, 0.0
        %796 = vst.msk [vmem:[#allocation2 + $0x20] sm:$0xff] %vm755, 0.0
        %797 = vst.msk [vmem:[#allocation2 + $0x28] sm:$0xff] %vm755, 0.0
        %798 = vst.msk [vmem:[#allocation2 + $0x30] sm:$0xff] %vm755, 0.0
        %799 = vst.msk [vmem:[#allocation2 + $0x38] sm:$0xff] %vm755, 0.0
        %800 = vst.msk [vmem:[#allocation2 + $0x40] sm:$0xff] %vm755, 0.0
        %801 = vst.msk [vmem:[#allocation2 + $0x48] sm:$0xff] %vm755, 0.0
        %802 = vst.msk [vmem:[#allocation2 + $0x50] sm:$0xff] %vm755, 0.0
        %803 = vst.msk [vmem:[#allocation2 + $0x58] sm:$0xff] %vm755, 0.0
        %804 = vst.msk [vmem:[#allocation2 + $0x60] sm:$0xff] %vm755, 0.0
        %805 = vst.msk [vmem:[#allocation2 + $0x68] sm:$0xff] %vm755, 0.0
        %806 = vst.msk [vmem:[#allocation2 + $0x70] sm:$0xff] %vm755, 0.0
        %807 = vst.msk [vmem:[#allocation2 + $0x78] sm:$0xff] %vm755, 0.0
        %808 = vst.msk [vmem:[#allocation2 + $0x80] sm:$0xff] %vm755, 0.0
        %809 = vst.msk [vmem:[#allocation2 + $0x88] sm:$0xff] %vm755, 0.0
        %810 = vst.msk [vmem:[#allocation2 + $0x90] sm:$0xff] %vm755, 0.0
        %811 = vst.msk [vmem:[#allocation2 + $0x98] sm:$0xff] %vm755, 0.0
        %812 = vst.msk [vmem:[#allocation2 + $0xa0] sm:$0xff] %vm755, 0.0
        %813 = vst.msk [vmem:[#allocation2 + $0xa8] sm:$0xff] %vm755, 0.0
        %814 = vst.msk [vmem:[#allocation2 + $0xb0] sm:$0xff] %vm755, 0.0
        %815 = vst.msk [vmem:[#allocation2 + $0xb8] sm:$0xff] %vm755, 0.0
        %816 = vst.msk [vmem:[#allocation2 + $0xc0] sm:$0xff] %vm755, 0.0
        %817 = vst.msk [vmem:[#allocation2 + $0xc8] sm:$0xff] %vm755, 0.0
        %818 = vst.msk [vmem:[#allocation2 + $0xd0] sm:$0xff] %vm755, 0.0
        %819 = vst.msk [vmem:[#allocation2 + $0xd8] sm:$0xff] %vm755, 0.0
        %820 = vst.msk [vmem:[#allocation2 + $0xe0] sm:$0xff] %vm755, 0.0
        %821 = vst.msk [vmem:[#allocation2 + $0xe8] sm:$0xff] %vm755, 0.0
        %822 = vst.msk [vmem:[#allocation2 + $0xf0] sm:$0xff] %vm755, 0.0
        %823 = vst.msk [vmem:[#allocation2 + $0xf8] sm:$0xff] %vm755, 0.0
        %v824 = vld [vmem:[#allocation2] sm:$0xff]
        %v825 = vld [vmem:[#allocation2 + $0x8] sm:$0xff]
        %v826 = vld [vmem:[#allocation2 + $0x10] sm:$0xff]
        %v827 = vld [vmem:[#allocation2 + $0x18] sm:$0xff]
        %v828 = vld [vmem:[#allocation2 + $0x20] sm:$0xff]
        %v829 = vld [vmem:[#allocation2 + $0x28] sm:$0xff]
        %v830 = vld [vmem:[#allocation2 + $0x30] sm:$0xff]
        %v831 = vld [vmem:[#allocation2 + $0x38] sm:$0xff]
        %v832 = vld [vmem:[#allocation2 + $0x40] sm:$0xff]
        %v833 = vld [vmem:[#allocation2 + $0x48] sm:$0xff]
        %v834 = vld [vmem:[#allocation2 + $0x50] sm:$0xff]
        %v835 = vld [vmem:[#allocation2 + $0x58] sm:$0xff]
        %v836 = vld [vmem:[#allocation2 + $0x60] sm:$0xff]
        %v837 = vld [vmem:[#allocation2 + $0x68] sm:$0xff]
        %v838 = vld [vmem:[#allocation2 + $0x70] sm:$0xff]
        %v839 = vld [vmem:[#allocation2 + $0x78] sm:$0xff]
        %v840 = vld [vmem:[#allocation2 + $0x80] sm:$0xff]
        %v841 = vld [vmem:[#allocation2 + $0x88] sm:$0xff]
        %v842 = vld [vmem:[#allocation2 + $0x90] sm:$0xff]
        %v843 = vld [vmem:[#allocation2 + $0x98] sm:$0xff]
        %v844 = vld [vmem:[#allocation2 + $0xa0] sm:$0xff]
        %v845 = vld [vmem:[#allocation2 + $0xa8] sm:$0xff]
        %v846 = vld [vmem:[#allocation2 + $0xb0] sm:$0xff]
        %v847 = vld [vmem:[#allocation2 + $0xb8] sm:$0xff]
        %v848 = vld [vmem:[#allocation2 + $0xc0] sm:$0xff]
        %v849 = vld [vmem:[#allocation2 + $0xc8] sm:$0xff]
        %v850 = vld [vmem:[#allocation2 + $0xd0] sm:$0xff]
        %v851 = vld [vmem:[#allocation2 + $0xd8] sm:$0xff]
        %v852 = vld [vmem:[#allocation2 + $0xe0] sm:$0xff]
        %v853 = vld [vmem:[#allocation2 + $0xe8] sm:$0xff]
        %v854 = vld [vmem:[#allocation2 + $0xf0] sm:$0xff]
        %v855 = vld [vmem:[#allocation2 + $0xf8] sm:$0xff]
        %v856 = vld [vmem:[%s1] sm:$0xff]
        %v857 = vld [vmem:[%s1 + $0x8] sm:$0xf]
        %vm858 = vcmask 97280
        %v860 = vsel %vm858, %v756, 0
        %v863 = vsel %vm858, %v757, 0
        %v866 = vsel %vm858, %v758, 0
        %v869 = vsel %vm858, %v759, 0
        %v872 = vsel %vm858, %v760, 0
        %v875 = vsel %vm858, %v761, 0
        %v878 = vsel %vm858, %v762, 0
        %v881 = vsel %vm858, %v763, 0
        %v884 = vsel %vm858, %v764, 0
        %v887 = vsel %vm858, %v765, 0
        %v890 = vsel %vm858, %v766, 0
        %v893 = vsel %vm858, %v767, 0
        %v896 = vsel %vm858, %v768, 0
        %v899 = vsel %vm858, %v769, 0
        %v902 = vsel %vm858, %v770, 0
        %v905 = vsel %vm858, %v771, 0
        %v908 = vsel %vm858, %v772, 0
        %v911 = vsel %vm858, %v773, 0
        %v914 = vsel %vm858, %v774, 0
        %v917 = vsel %vm858, %v775, 0
        %v920 = vsel %vm858, %v776, 0
        %v923 = vsel %vm858, %v777, 0
        %v926 = vsel %vm858, %v778, 0
        %v929 = vsel %vm858, %v779, 0
        %v932 = vsel %vm858, %v780, 0
        %v935 = vsel %vm858, %v781, 0
        %v938 = vsel %vm858, %v782, 0
        %v941 = vsel %vm858, %v783, 0
        %v944 = vsel %vm858, %v784, 0
        %v947 = vsel %vm858, %v785, 0
        %v950 = vsel %vm858, %v786, 0
        %v953 = vsel %vm858, %v787, 0
        %vm955 = vcmask 1043456
        %v957 = vsel %vm955, %v857, 0
        %959 = vmatpush.msra.mxu0 0.0
        %960 = vmatpush.msra.mxu0 0.0
        %961 = vmatpush.msra.mxu0 0.0
        %962 = vmatpush.msra.mxu0 0.0
        %963 = vmatpush.msra.mxu0 0.0
        %964 = vmatpush.msra.mxu0 0.0
        %965 = vmatpush.msra.mxu0 0.0
        %966 = vmatpush.msra.mxu0 0.0
        %967 = vmatpush.msra.mxu0 0.0
        %968 = vmatpush.msra.mxu0 0.0
        %969 = vmatpush.msra.mxu0 0.0
        %970 = vmatpush.msra.mxu0 0.0
        %971 = vmatpush.msra.mxu0 0.0
        %972 = vmatpush.msra.mxu0 0.0
        %973 = vmatpush.msra.mxu0 %v957
        %974 = vmatpush.msra.mxu0 %v856
        %975 = vmatmul.f32.gmra.mxu0 %v860
        %v976 = vpop.f32.mrf.mxu0
        %v977 = vadd.f32 0.0, %v976
        %978 = vmatmul.f32.gmra.mxu0 %v863
        %v979 = vpop.f32.mrf.mxu0
        %v980 = vadd.f32 0.0, %v979
        %981 = vmatmul.f32.gmra.mxu0 %v866
        %v982 = vpop.f32.mrf.mxu0
        %v983 = vadd.f32 0.0, %v982
        %984 = vmatmul.f32.gmra.mxu0 %v869
        %v985 = vpop.f32.mrf.mxu0
        %v986 = vadd.f32 0.0, %v985
        %987 = vmatmul.f32.gmra.mxu0 %v872
        %v988 = vpop.f32.mrf.mxu0
        %v989 = vadd.f32 0.0, %v988
        %990 = vmatmul.f32.gmra.mxu0 %v875
        %v991 = vpop.f32.mrf.mxu0
        %v992 = vadd.f32 0.0, %v991
        %993 = vmatmul.f32.gmra.mxu0 %v878
        %v994 = vpop.f32.mrf.mxu0
        %v995 = vadd.f32 0.0, %v994
        %996 = vmatmul.f32.gmra.mxu0 %v881
        %v997 = vpop.f32.mrf.mxu0
        %v998 = vadd.f32 0.0, %v997
        %999 = vmatmul.f32.gmra.mxu0 %v884
        %v1000 = vpop.f32.mrf.mxu0
        %v1001 = vadd.f32 0.0, %v1000
        %1002 = vmatmul.f32.gmra.mxu0 %v887
        %v1003 = vpop.f32.mrf.mxu0
        %v1004 = vadd.f32 0.0, %v1003
        %1005 = vmatmul.f32.gmra.mxu0 %v890
        %v1006 = vpop.f32.mrf.mxu0
        %v1007 = vadd.f32 0.0, %v1006
        %1008 = vmatmul.f32.gmra.mxu0 %v893
        %v1009 = vpop.f32.mrf.mxu0
        %v1010 = vadd.f32 0.0, %v1009
        %1011 = vmatmul.f32.gmra.mxu0 %v896
        %v1012 = vpop.f32.mrf.mxu0
        %v1013 = vadd.f32 0.0, %v1012
        %1014 = vmatmul.f32.gmra.mxu0 %v899
        %v1015 = vpop.f32.mrf.mxu0
        %v1016 = vadd.f32 0.0, %v1015
        %1017 = vmatmul.f32.gmra.mxu0 %v902
        %v1018 = vpop.f32.mrf.mxu0
        %v1019 = vadd.f32 0.0, %v1018
        %1020 = vmatmul.f32.gmra.mxu0 %v905
        %v1021 = vpop.f32.mrf.mxu0
        %v1022 = vadd.f32 0.0, %v1021
        %1023 = vmatmul.f32.gmra.mxu0 %v908
        %v1024 = vpop.f32.mrf.mxu0
        %v1025 = vadd.f32 0.0, %v1024
        %1026 = vmatmul.f32.gmra.mxu0 %v911
        %v1027 = vpop.f32.mrf.mxu0
        %v1028 = vadd.f32 0.0, %v1027
        %1029 = vmatmul.f32.gmra.mxu0 %v914
        %v1030 = vpop.f32.mrf.mxu0
        %v1031 = vadd.f32 0.0, %v1030
        %1032 = vmatmul.f32.gmra.mxu0 %v917
        %v1033 = vpop.f32.mrf.mxu0
        %v1034 = vadd.f32 0.0, %v1033
        %1035 = vmatmul.f32.gmra.mxu0 %v920
        %v1036 = vpop.f32.mrf.mxu0
        %v1037 = vadd.f32 0.0, %v1036
        %1038 = vmatmul.f32.gmra.mxu0 %v923
        %v1039 = vpop.f32.mrf.mxu0
        %v1040 = vadd.f32 0.0, %v1039
        %1041 = vmatmul.f32.gmra.mxu0 %v926
        %v1042 = vpop.f32.mrf.mxu0
        %v1043 = vadd.f32 0.0, %v1042
        %1044 = vmatmul.f32.gmra.mxu0 %v929
        %v1045 = vpop.f32.mrf.mxu0
        %v1046 = vadd.f32 0.0, %v1045
        %1047 = vmatmul.f32.gmra.mxu0 %v932
        %v1048 = vpop.f32.mrf.mxu0
        %v1049 = vadd.f32 0.0, %v1048
        %1050 = vmatmul.f32.gmra.mxu0 %v935
        %v1051 = vpop.f32.mrf.mxu0
        %v1052 = vadd.f32 0.0, %v1051
        %1053 = vmatmul.f32.gmra.mxu0 %v938
        %v1054 = vpop.f32.mrf.mxu0
        %v1055 = vadd.f32 0.0, %v1054
        %1056 = vmatmul.f32.gmra.mxu0 %v941
        %v1057 = vpop.f32.mrf.mxu0
        %v1058 = vadd.f32 0.0, %v1057
        %1059 = vmatmul.f32.gmra.mxu0 %v944
        %v1060 = vpop.f32.mrf.mxu0
        %v1061 = vadd.f32 0.0, %v1060
        %1062 = vmatmul.f32.gmra.mxu0 %v947
        %v1063 = vpop.f32.mrf.mxu0
        %v1064 = vadd.f32 0.0, %v1063
        %1065 = vmatmul.f32.gmra.mxu0 %v950
        %v1066 = vpop.f32.mrf.mxu0
        %v1067 = vadd.f32 0.0, %v1066
        %1068 = vmatmul.f32.gmra.mxu0 %v953
        %v1069 = vpop.f32.mrf.mxu0
        %v1070 = vadd.f32 0.0, %v1069
        %1071 = vdwg.mxu0
        %v1072 = vadd.f32 %v824, %v977
        %v1073 = vadd.f32 %v825, %v980
        %v1074 = vadd.f32 %v826, %v983
        %v1075 = vadd.f32 %v827, %v986
        %v1076 = vadd.f32 %v828, %v989
        %v1077 = vadd.f32 %v829, %v992
        %v1078 = vadd.f32 %v830, %v995
        %v1079 = vadd.f32 %v831, %v998
        %v1080 = vadd.f32 %v832, %v1001
        %v1081 = vadd.f32 %v833, %v1004
        %v1082 = vadd.f32 %v834, %v1007
        %v1083 = vadd.f32 %v835, %v1010
        %v1084 = vadd.f32 %v836, %v1013
        %v1085 = vadd.f32 %v837, %v1016
        %v1086 = vadd.f32 %v838, %v1019
        %v1087 = vadd.f32 %v839, %v1022
        %v1088 = vadd.f32 %v840, %v1025
        %v1089 = vadd.f32 %v841, %v1028
        %v1090 = vadd.f32 %v842, %v1031
        %v1091 = vadd.f32 %v843, %v1034
        %v1092 = vadd.f32 %v844, %v1037
        %v1093 = vadd.f32 %v845, %v1040
        %v1094 = vadd.f32 %v846, %v1043
        %v1095 = vadd.f32 %v847, %v1046
        %v1096 = vadd.f32 %v848, %v1049
        %v1097 = vadd.f32 %v849, %v1052
        %v1098 = vadd.f32 %v850, %v1055
        %v1099 = vadd.f32 %v851, %v1058
        %v1100 = vadd.f32 %v852, %v1061
        %v1101 = vadd.f32 %v853, %v1064
        %v1102 = vadd.f32 %v854, %v1067
        %v1103 = vadd.f32 %v855, %v1070
        %1104 = vst.msk [vmem:[#allocation2] sm:$0xff] %vm755, %v1072
        %1105 = vst.msk [vmem:[#allocation2 + $0x8] sm:$0xff] %vm755, %v1073
        %1106 = vst.msk [vmem:[#allocation2 + $0x10] sm:$0xff] %vm755, %v1074
        %1107 = vst.msk [vmem:[#allocation2 + $0x18] sm:$0xff] %vm755, %v1075
        %1108 = vst.msk [vmem:[#allocation2 + $0x20] sm:$0xff] %vm755, %v1076
        %1109 = vst.msk [vmem:[#allocation2 + $0x28] sm:$0xff] %vm755, %v1077
        %1110 = vst.msk [vmem:[#allocation2 + $0x30] sm:$0xff] %vm755, %v1078
        %1111 = vst.msk [vmem:[#allocation2 + $0x38] sm:$0xff] %vm755, %v1079
        %1112 = vst.msk [vmem:[#allocation2 + $0x40] sm:$0xff] %vm755, %v1080
        %1113 = vst.msk [vmem:[#allocation2 + $0x48] sm:$0xff] %vm755, %v1081
        %1114 = vst.msk [vmem:[#allocation2 + $0x50] sm:$0xff] %vm755, %v1082
        %1115 = vst.msk [vmem:[#allocation2 + $0x58] sm:$0xff] %vm755, %v1083
        %1116 = vst.msk [vmem:[#allocation2 + $0x60] sm:$0xff] %vm755, %v1084
        %1117 = vst.msk [vmem:[#allocation2 + $0x68] sm:$0xff] %vm755, %v1085
        %1118 = vst.msk [vmem:[#allocation2 + $0x70] sm:$0xff] %vm755, %v1086
        %1119 = vst.msk [vmem:[#allocation2 + $0x78] sm:$0xff] %vm755, %v1087
        %1120 = vst.msk [vmem:[#allocation2 + $0x80] sm:$0xff] %vm755, %v1088
        %1121 = vst.msk [vmem:[#allocation2 + $0x88] sm:$0xff] %vm755, %v1089
        %1122 = vst.msk [vmem:[#allocation2 + $0x90] sm:$0xff] %vm755, %v1090
        %1123 = vst.msk [vmem:[#allocation2 + $0x98] sm:$0xff] %vm755, %v1091
        %1124 = vst.msk [vmem:[#allocation2 + $0xa0] sm:$0xff] %vm755, %v1092
        %1125 = vst.msk [vmem:[#allocation2 + $0xa8] sm:$0xff] %vm755, %v1093
        %1126 = vst.msk [vmem:[#allocation2 + $0xb0] sm:$0xff] %vm755, %v1094
        %1127 = vst.msk [vmem:[#allocation2 + $0xb8] sm:$0xff] %vm755, %v1095
        %1128 = vst.msk [vmem:[#allocation2 + $0xc0] sm:$0xff] %vm755, %v1096
        %1129 = vst.msk [vmem:[#allocation2 + $0xc8] sm:$0xff] %vm755, %v1097
        %1130 = vst.msk [vmem:[#allocation2 + $0xd0] sm:$0xff] %vm755, %v1098
        %1131 = vst.msk [vmem:[#allocation2 + $0xd8] sm:$0xff] %vm755, %v1099
        %1132 = vst.msk [vmem:[#allocation2 + $0xe0] sm:$0xff] %vm755, %v1100
        %1133 = vst.msk [vmem:[#allocation2 + $0xe8] sm:$0xff] %vm755, %v1101
        %1134 = vst.msk [vmem:[#allocation2 + $0xf0] sm:$0xff] %vm755, %v1102
        %1135 = vst.msk [vmem:[#allocation2 + $0xf8] sm:$0xff] %vm755, %v1103
        %v1136 = vld [vmem:[#allocation2] sm:$0xff]
        %v1137 = vld [vmem:[#allocation2 + $0x8] sm:$0xff]
        %v1138 = vld [vmem:[#allocation2 + $0x10] sm:$0xff]
        %v1139 = vld [vmem:[#allocation2 + $0x18] sm:$0xff]
        %v1140 = vld [vmem:[#allocation2 + $0x20] sm:$0xff]
        %v1141 = vld [vmem:[#allocation2 + $0x28] sm:$0xff]
        %v1142 = vld [vmem:[#allocation2 + $0x30] sm:$0xff]
        %v1143 = vld [vmem:[#allocation2 + $0x38] sm:$0xff]
        %v1144 = vld [vmem:[#allocation2 + $0x40] sm:$0xff]
        %v1145 = vld [vmem:[#allocation2 + $0x48] sm:$0xff]
        %v1146 = vld [vmem:[#allocation2 + $0x50] sm:$0xff]
        %v1147 = vld [vmem:[#allocation2 + $0x58] sm:$0xff]
        %v1148 = vld [vmem:[#allocation2 + $0x60] sm:$0xff]
        %v1149 = vld [vmem:[#allocation2 + $0x68] sm:$0xff]
        %v1150 = vld [vmem:[#allocation2 + $0x70] sm:$0xff]
        %v1151 = vld [vmem:[#allocation2 + $0x78] sm:$0xff]
        %v1152 = vld [vmem:[#allocation2 + $0x80] sm:$0xff]
        %v1153 = vld [vmem:[#allocation2 + $0x88] sm:$0xff]
        %v1154 = vld [vmem:[#allocation2 + $0x90] sm:$0xff]
        %v1155 = vld [vmem:[#allocation2 + $0x98] sm:$0xff]
        %v1156 = vld [vmem:[#allocation2 + $0xa0] sm:$0xff]
        %v1157 = vld [vmem:[#allocation2 + $0xa8] sm:$0xff]
        %v1158 = vld [vmem:[#allocation2 + $0xb0] sm:$0xff]
        %v1159 = vld [vmem:[#allocation2 + $0xb8] sm:$0xff]
        %v1160 = vld [vmem:[#allocation2 + $0xc0] sm:$0xff]
        %v1161 = vld [vmem:[#allocation2 + $0xc8] sm:$0xff]
        %v1162 = vld [vmem:[#allocation2 + $0xd0] sm:$0xff]
        %v1163 = vld [vmem:[#allocation2 + $0xd8] sm:$0xff]
        %v1164 = vld [vmem:[#allocation2 + $0xe0] sm:$0xff]
        %v1165 = vld [vmem:[#allocation2 + $0xe8] sm:$0xff]
        %v1166 = vld [vmem:[#allocation2 + $0xf0] sm:$0xff]
        %v1167 = vld [vmem:[#allocation2 + $0xf8] sm:$0xff]
        %s1168 = scalar_lea.vmem %s1, 16
        %v1169 = vld [vmem:[%s1168] sm:$0xff]
        %v1170 = vld [vmem:[%s1168 + $0x8] sm:$0xf]
        %v1172 = vsel %vm858, %v788, 0
        %v1175 = vsel %vm858, %v789, 0
        %v1178 = vsel %vm955, %v1170, 0
        %1180 = vmatpush.msra.mxu0 0.0
        %1181 = vmatpush.msra.mxu0 0.0
        %1182 = vmatpush.msra.mxu0 0.0
        %1183 = vmatpush.msra.mxu0 0.0
        %1184 = vmatpush.msra.mxu0 0.0
        %1185 = vmatpush.msra.mxu0 0.0
        %1186 = vmatpush.msra.mxu0 0.0
        %1187 = vmatpush.msra.mxu0 0.0
        %1188 = vmatpush.msra.mxu0 0.0
        %1189 = vmatpush.msra.mxu0 0.0
        %1190 = vmatpush.msra.mxu0 0.0
        %1191 = vmatpush.msra.mxu0 0.0
        %1192 = vmatpush.msra.mxu0 0.0
        %1193 = vmatpush.msra.mxu0 0.0
        %1194 = vmatpush.msra.mxu0 %v1178
        %1195 = vmatpush.msra.mxu0 %v1169
        %1196 = vmatmul.f32.gmra.mxu0 %v866
        %v1197 = vpop.f32.mrf.mxu0
        %v1198 = vadd.f32 0.0, %v1197
        %1199 = vmatmul.f32.gmra.mxu0 %v869
        %v1200 = vpop.f32.mrf.mxu0
        %v1201 = vadd.f32 0.0, %v1200
        %1202 = vmatmul.f32.gmra.mxu0 %v872
        %v1203 = vpop.f32.mrf.mxu0
        %v1204 = vadd.f32 0.0, %v1203
        %1205 = vmatmul.f32.gmra.mxu0 %v875
        %v1206 = vpop.f32.mrf.mxu0
        %v1207 = vadd.f32 0.0, %v1206
        %1208 = vmatmul.f32.gmra.mxu0 %v878
        %v1209 = vpop.f32.mrf.mxu0
        %v1210 = vadd.f32 0.0, %v1209
        %1211 = vmatmul.f32.gmra.mxu0 %v881
        %v1212 = vpop.f32.mrf.mxu0
        %v1213 = vadd.f32 0.0, %v1212
        %1214 = vmatmul.f32.gmra.mxu0 %v884
        %v1215 = vpop.f32.mrf.mxu0
        %v1216 = vadd.f32 0.0, %v1215
        %1217 = vmatmul.f32.gmra.mxu0 %v887
        %v1218 = vpop.f32.mrf.mxu0
        %v1219 = vadd.f32 0.0, %v1218
        %1220 = vmatmul.f32.gmra.mxu0 %v890
        %v1221 = vpop.f32.mrf.mxu0
        %v1222 = vadd.f32 0.0, %v1221
        %1223 = vmatmul.f32.gmra.mxu0 %v893
        %v1224 = vpop.f32.mrf.mxu0
        %v1225 = vadd.f32 0.0, %v1224
        %1226 = vmatmul.f32.gmra.mxu0 %v896
        %v1227 = vpop.f32.mrf.mxu0
        %v1228 = vadd.f32 0.0, %v1227
        %1229 = vmatmul.f32.gmra.mxu0 %v899
        %v1230 = vpop.f32.mrf.mxu0
        %v1231 = vadd.f32 0.0, %v1230
        %1232 = vmatmul.f32.gmra.mxu0 %v902
        %v1233 = vpop.f32.mrf.mxu0
        %v1234 = vadd.f32 0.0, %v1233
        %1235 = vmatmul.f32.gmra.mxu0 %v905
        %v1236 = vpop.f32.mrf.mxu0
        %v1237 = vadd.f32 0.0, %v1236
        %1238 = vmatmul.f32.gmra.mxu0 %v908
        %v1239 = vpop.f32.mrf.mxu0
        %v1240 = vadd.f32 0.0, %v1239
        %1241 = vmatmul.f32.gmra.mxu0 %v911
        %v1242 = vpop.f32.mrf.mxu0
        %v1243 = vadd.f32 0.0, %v1242
        %1244 = vmatmul.f32.gmra.mxu0 %v914
        %v1245 = vpop.f32.mrf.mxu0
        %v1246 = vadd.f32 0.0, %v1245
        %1247 = vmatmul.f32.gmra.mxu0 %v917
        %v1248 = vpop.f32.mrf.mxu0
        %v1249 = vadd.f32 0.0, %v1248
        %1250 = vmatmul.f32.gmra.mxu0 %v920
        %v1251 = vpop.f32.mrf.mxu0
        %v1252 = vadd.f32 0.0, %v1251
        %1253 = vmatmul.f32.gmra.mxu0 %v923
        %v1254 = vpop.f32.mrf.mxu0
        %v1255 = vadd.f32 0.0, %v1254
        %1256 = vmatmul.f32.gmra.mxu0 %v926
        %v1257 = vpop.f32.mrf.mxu0
        %v1258 = vadd.f32 0.0, %v1257
        %1259 = vmatmul.f32.gmra.mxu0 %v929
        %v1260 = vpop.f32.mrf.mxu0
        %v1261 = vadd.f32 0.0, %v1260
        %1262 = vmatmul.f32.gmra.mxu0 %v932
        %v1263 = vpop.f32.mrf.mxu0
        %v1264 = vadd.f32 0.0, %v1263
        %1265 = vmatmul.f32.gmra.mxu0 %v935
        %v1266 = vpop.f32.mrf.mxu0
        %v1267 = vadd.f32 0.0, %v1266
        %1268 = vmatmul.f32.gmra.mxu0 %v938
        %v1269 = vpop.f32.mrf.mxu0
        %v1270 = vadd.f32 0.0, %v1269
        %1271 = vmatmul.f32.gmra.mxu0 %v941
        %v1272 = vpop.f32.mrf.mxu0
        %v1273 = vadd.f32 0.0, %v1272
        %1274 = vmatmul.f32.gmra.mxu0 %v944
        %v1275 = vpop.f32.mrf.mxu0
        %v1276 = vadd.f32 0.0, %v1275
        %1277 = vmatmul.f32.gmra.mxu0 %v947
        %v1278 = vpop.f32.mrf.mxu0
        %v1279 = vadd.f32 0.0, %v1278
        %1280 = vmatmul.f32.gmra.mxu0 %v950
        %v1281 = vpop.f32.mrf.mxu0
        %v1282 = vadd.f32 0.0, %v1281
        %1283 = vmatmul.f32.gmra.mxu0 %v953
        %v1284 = vpop.f32.mrf.mxu0
        %v1285 = vadd.f32 0.0, %v1284
        %1286 = vmatmul.f32.gmra.mxu0 %v1172
        %v1287 = vpop.f32.mrf.mxu0
        %v1288 = vadd.f32 0.0, %v1287
        %1289 = vmatmul.f32.gmra.mxu0 %v1175
        %v1290 = vpop.f32.mrf.mxu0
        %v1291 = vadd.f32 0.0, %v1290
        %1292 = vdwg.mxu0
        %v1293 = vadd.f32 %v1136, %v1198
        %v1294 = vadd.f32 %v1137, %v1201
        %v1295 = vadd.f32 %v1138, %v1204
        %v1296 = vadd.f32 %v1139, %v1207
        %v1297 = vadd.f32 %v1140, %v1210
        %v1298 = vadd.f32 %v1141, %v1213
        %v1299 = vadd.f32 %v1142, %v1216
        %v1300 = vadd.f32 %v1143, %v1219
        %v1301 = vadd.f32 %v1144, %v1222
        %v1302 = vadd.f32 %v1145, %v1225
        %v1303 = vadd.f32 %v1146, %v1228
        %v1304 = vadd.f32 %v1147, %v1231
        %v1305 = vadd.f32 %v1148, %v1234
        %v1306 = vadd.f32 %v1149, %v1237
        %v1307 = vadd.f32 %v1150, %v1240
        %v1308 = vadd.f32 %v1151, %v1243
        %v1309 = vadd.f32 %v1152, %v1246
        %v1310 = vadd.f32 %v1153, %v1249
        %v1311 = vadd.f32 %v1154, %v1252
        %v1312 = vadd.f32 %v1155, %v1255
        %v1313 = vadd.f32 %v1156, %v1258
        %v1314 = vadd.f32 %v1157, %v1261
        %v1315 = vadd.f32 %v1158, %v1264
        %v1316 = vadd.f32 %v1159, %v1267
        %v1317 = vadd.f32 %v1160, %v1270
        %v1318 = vadd.f32 %v1161, %v1273
        %v1319 = vadd.f32 %v1162, %v1276
        %v1320 = vadd.f32 %v1163, %v1279
        %v1321 = vadd.f32 %v1164, %v1282
        %v1322 = vadd.f32 %v1165, %v1285
        %v1323 = vadd.f32 %v1166, %v1288
        %v1324 = vadd.f32 %v1167, %v1291
        %1325 = vst.msk [vmem:[#allocation2] sm:$0xff] %vm755, %v1293
        %1326 = vst.msk [vmem:[#allocation2 + $0x8] sm:$0xff] %vm755, %v1294
        %1327 = vst.msk [vmem:[#allocation2 + $0x10] sm:$0xff] %vm755, %v1295
        %1328 = vst.msk [vmem:[#allocation2 + $0x18] sm:$0xff] %vm755, %v1296
        %1329 = vst.msk [vmem:[#allocation2 + $0x20] sm:$0xff] %vm755, %v1297
        %1330 = vst.msk [vmem:[#allocation2 + $0x28] sm:$0xff] %vm755, %v1298
        %1331 = vst.msk [vmem:[#allocation2 + $0x30] sm:$0xff] %vm755, %v1299
        %1332 = vst.msk [vmem:[#allocation2 + $0x38] sm:$0xff] %vm755, %v1300
        %1333 = vst.msk [vmem:[#allocation2 + $0x40] sm:$0xff] %vm755, %v1301
        %1334 = vst.msk [vmem:[#allocation2 + $0x48] sm:$0xff] %vm755, %v1302
        %1335 = vst.msk [vmem:[#allocation2 + $0x50] sm:$0xff] %vm755, %v1303
        %1336 = vst.msk [vmem:[#allocation2 + $0x58] sm:$0xff] %vm755, %v1304
        %1337 = vst.msk [vmem:[#allocation2 + $0x60] sm:$0xff] %vm755, %v1305
        %1338 = vst.msk [vmem:[#allocation2 + $0x68] sm:$0xff] %vm755, %v1306
        %1339 = vst.msk [vmem:[#allocation2 + $0x70] sm:$0xff] %vm755, %v1307
        %1340 = vst.msk [vmem:[#allocation2 + $0x78] sm:$0xff] %vm755, %v1308
        %1341 = vst.msk [vmem:[#allocation2 + $0x80] sm:$0xff] %vm755, %v1309
        %1342 = vst.msk [vmem:[#allocation2 + $0x88] sm:$0xff] %vm755, %v1310
        %1343 = vst.msk [vmem:[#allocation2 + $0x90] sm:$0xff] %vm755, %v1311
        %1344 = vst.msk [vmem:[#allocation2 + $0x98] sm:$0xff] %vm755, %v1312
        %1345 = vst.msk [vmem:[#allocation2 + $0xa0] sm:$0xff] %vm755, %v1313
        %1346 = vst.msk [vmem:[#allocation2 + $0xa8] sm:$0xff] %vm755, %v1314
        %1347 = vst.msk [vmem:[#allocation2 + $0xb0] sm:$0xff] %vm755, %v1315
        %1348 = vst.msk [vmem:[#allocation2 + $0xb8] sm:$0xff] %vm755, %v1316
        %1349 = vst.msk [vmem:[#allocation2 + $0xc0] sm:$0xff] %vm755, %v1317
        %1350 = vst.msk [vmem:[#allocation2 + $0xc8] sm:$0xff] %vm755, %v1318
        %1351 = vst.msk [vmem:[#allocation2 + $0xd0] sm:$0xff] %vm755, %v1319
        %1352 = vst.msk [vmem:[#allocation2 + $0xd8] sm:$0xff] %vm755, %v1320
        %1353 = vst.msk [vmem:[#allocation2 + $0xe0] sm:$0xff] %vm755, %v1321
        %1354 = vst.msk [vmem:[#allocation2 + $0xe8] sm:$0xff] %vm755, %v1322
        %1355 = vst.msk [vmem:[#allocation2 + $0xf0] sm:$0xff] %vm755, %v1323
        %1356 = vst.msk [vmem:[#allocation2 + $0xf8] sm:$0xff] %vm755, %v1324
        %v1357 = vld [vmem:[#allocation2] sm:$0xff]
        %v1358 = vld [vmem:[#allocation2 + $0x8] sm:$0xff]
        %v1359 = vld [vmem:[#allocation2 + $0x10] sm:$0xff]
        %v1360 = vld [vmem:[#allocation2 + $0x18] sm:$0xff]
        %v1361 = vld [vmem:[#allocation2 + $0x20] sm:$0xff]
        %v1362 = vld [vmem:[#allocation2 + $0x28] sm:$0xff]
        %v1363 = vld [vmem:[#allocation2 + $0x30] sm:$0xff]
        %v1364 = vld [vmem:[#allocation2 + $0x38] sm:$0xff]
        %v1365 = vld [vmem:[#allocation2 + $0x40] sm:$0xff]
        %v1366 = vld [vmem:[#allocation2 + $0x48] sm:$0xff]
        %v1367 = vld [vmem:[#allocation2 + $0x50] sm:$0xff]
        %v1368 = vld [vmem:[#allocation2 + $0x58] sm:$0xff]
        %v1369 = vld [vmem:[#allocation2 + $0x60] sm:$0xff]
        %v1370 = vld [vmem:[#allocation2 + $0x68] sm:$0xff]
        %v1371 = vld [vmem:[#allocation2 + $0x70] sm:$0xff]
        %v1372 = vld [vmem:[#allocation2 + $0x78] sm:$0xff]
        %v1373 = vld [vmem:[#allocation2 + $0x80] sm:$0xff]
        %v1374 = vld [vmem:[#allocation2 + $0x88] sm:$0xff]
        %v1375 = vld [vmem:[#allocation2 + $0x90] sm:$0xff]
        %v1376 = vld [vmem:[#allocation2 + $0x98] sm:$0xff]
        %v1377 = vld [vmem:[#allocation2 + $0xa0] sm:$0xff]
        %v1378 = vld [vmem:[#allocation2 + $0xa8] sm:$0xff]
        %v1379 = vld [vmem:[#allocation2 + $0xb0] sm:$0xff]
        %v1380 = vld [vmem:[#allocation2 + $0xb8] sm:$0xff]
        %v1381 = vld [vmem:[#allocation2 + $0xc0] sm:$0xff]
        %v1382 = vld [vmem:[#allocation2 + $0xc8] sm:$0xff]
        %v1383 = vld [vmem:[#allocation2 + $0xd0] sm:$0xff]
        %v1384 = vld [vmem:[#allocation2 + $0xd8] sm:$0xff]
        %v1385 = vld [vmem:[#allocation2 + $0xe0] sm:$0xff]
        %v1386 = vld [vmem:[#allocation2 + $0xe8] sm:$0xff]
        %v1387 = vld [vmem:[#allocation2 + $0xf0] sm:$0xff]
        %v1388 = vld [vmem:[#allocation2 + $0xf8] sm:$0xff]
        %s1389 = scalar_lea.vmem %s1, 32
        %v1390 = vld [vmem:[%s1389] sm:$0xff]
        %v1391 = vld [vmem:[%s1389 + $0x8] sm:$0xf]
        %v1393 = vsel %vm858, %v790, 0
        %v1396 = vsel %vm858, %v791, 0
        %v1399 = vsel %vm955, %v1391, 0
        %1401 = vmatpush.msra.mxu0 0.0
        %1402 = vmatpush.msra.mxu0 0.0
        %1403 = vmatpush.msra.mxu0 0.0
        %1404 = vmatpush.msra.mxu0 0.0
        %1405 = vmatpush.msra.mxu0 0.0
        %1406 = vmatpush.msra.mxu0 0.0
        %1407 = vmatpush.msra.mxu0 0.0
        %1408 = vmatpush.msra.mxu0 0.0
        %1409 = vmatpush.msra.mxu0 0.0
        %1410 = vmatpush.msra.mxu0 0.0
        %1411 = vmatpush.msra.mxu0 0.0
        %1412 = vmatpush.msra.mxu0 0.0
        %1413 = vmatpush.msra.mxu0 0.0
        %1414 = vmatpush.msra.mxu0 0.0
        %1415 = vmatpush.msra.mxu0 %v1399
        %1416 = vmatpush.msra.mxu0 %v1390
        %1417 = vmatmul.f32.gmra.mxu0 %v872
        %v1418 = vpop.f32.mrf.mxu0
        %v1419 = vadd.f32 0.0, %v1418
        %1420 = vmatmul.f32.gmra.mxu0 %v875
        %v1421 = vpop.f32.mrf.mxu0
        %v1422 = vadd.f32 0.0, %v1421
        %1423 = vmatmul.f32.gmra.mxu0 %v878
        %v1424 = vpop.f32.mrf.mxu0
        %v1425 = vadd.f32 0.0, %v1424
        %1426 = vmatmul.f32.gmra.mxu0 %v881
        %v1427 = vpop.f32.mrf.mxu0
        %v1428 = vadd.f32 0.0, %v1427
        %1429 = vmatmul.f32.gmra.mxu0 %v884
        %v1430 = vpop.f32.mrf.mxu0
        %v1431 = vadd.f32 0.0, %v1430
        %1432 = vmatmul.f32.gmra.mxu0 %v887
        %v1433 = vpop.f32.mrf.mxu0
        %v1434 = vadd.f32 0.0, %v1433
        %1435 = vmatmul.f32.gmra.mxu0 %v890
        %v1436 = vpop.f32.mrf.mxu0
        %v1437 = vadd.f32 0.0, %v1436
        %1438 = vmatmul.f32.gmra.mxu0 %v893
        %v1439 = vpop.f32.mrf.mxu0
        %v1440 = vadd.f32 0.0, %v1439
        %1441 = vmatmul.f32.gmra.mxu0 %v896
        %v1442 = vpop.f32.mrf.mxu0
        %v1443 = vadd.f32 0.0, %v1442
        %1444 = vmatmul.f32.gmra.mxu0 %v899
        %v1445 = vpop.f32.mrf.mxu0
        %v1446 = vadd.f32 0.0, %v1445
        %1447 = vmatmul.f32.gmra.mxu0 %v902
        %v1448 = vpop.f32.mrf.mxu0
        %v1449 = vadd.f32 0.0, %v1448
        %1450 = vmatmul.f32.gmra.mxu0 %v905
        %v1451 = vpop.f32.mrf.mxu0
        %v1452 = vadd.f32 0.0, %v1451
        %1453 = vmatmul.f32.gmra.mxu0 %v908
        %v1454 = vpop.f32.mrf.mxu0
        %v1455 = vadd.f32 0.0, %v1454
        %1456 = vmatmul.f32.gmra.mxu0 %v911
        %v1457 = vpop.f32.mrf.mxu0
        %v1458 = vadd.f32 0.0, %v1457
        %1459 = vmatmul.f32.gmra.mxu0 %v914
        %v1460 = vpop.f32.mrf.mxu0
        %v1461 = vadd.f32 0.0, %v1460
        %1462 = vmatmul.f32.gmra.mxu0 %v917
        %v1463 = vpop.f32.mrf.mxu0
        %v1464 = vadd.f32 0.0, %v1463
        %1465 = vmatmul.f32.gmra.mxu0 %v920
        %v1466 = vpop.f32.mrf.mxu0
        %v1467 = vadd.f32 0.0, %v1466
        %1468 = vmatmul.f32.gmra.mxu0 %v923
        %v1469 = vpop.f32.mrf.mxu0
        %v1470 = vadd.f32 0.0, %v1469
        %1471 = vmatmul.f32.gmra.mxu0 %v926
        %v1472 = vpop.f32.mrf.mxu0
        %v1473 = vadd.f32 0.0, %v1472
        %1474 = vmatmul.f32.gmra.mxu0 %v929
        %v1475 = vpop.f32.mrf.mxu0
        %v1476 = vadd.f32 0.0, %v1475
        %1477 = vmatmul.f32.gmra.mxu0 %v932
        %v1478 = vpop.f32.mrf.mxu0
        %v1479 = vadd.f32 0.0, %v1478
        %1480 = vmatmul.f32.gmra.mxu0 %v935
        %v1481 = vpop.f32.mrf.mxu0
        %v1482 = vadd.f32 0.0, %v1481
        %1483 = vmatmul.f32.gmra.mxu0 %v938
        %v1484 = vpop.f32.mrf.mxu0
        %v1485 = vadd.f32 0.0, %v1484
        %1486 = vmatmul.f32.gmra.mxu0 %v941
        %v1487 = vpop.f32.mrf.mxu0
        %v1488 = vadd.f32 0.0, %v1487
        %1489 = vmatmul.f32.gmra.mxu0 %v944
        %v1490 = vpop.f32.mrf.mxu0
        %v1491 = vadd.f32 0.0, %v1490
        %1492 = vmatmul.f32.gmra.mxu0 %v947
        %v1493 = vpop.f32.mrf.mxu0
        %v1494 = vadd.f32 0.0, %v1493
        %1495 = vmatmul.f32.gmra.mxu0 %v950
        %v1496 = vpop.f32.mrf.mxu0
        %v1497 = vadd.f32 0.0, %v1496
        %1498 = vmatmul.f32.gmra.mxu0 %v953
        %v1499 = vpop.f32.mrf.mxu0
        %v1500 = vadd.f32 0.0, %v1499
        %1501 = vmatmul.f32.gmra.mxu0 %v1172
        %v1502 = vpop.f32.mrf.mxu0
        %v1503 = vadd.f32 0.0, %v1502
        %1504 = vmatmul.f32.gmra.mxu0 %v1175
        %v1505 = vpop.f32.mrf.mxu0
        %v1506 = vadd.f32 0.0, %v1505
        %1507 = vmatmul.f32.gmra.mxu0 %v1393
        %v1508 = vpop.f32.mrf.mxu0
        %v1509 = vadd.f32 0.0, %v1508
        %1510 = vmatmul.f32.gmra.mxu0 %v1396
        %v1511 = vpop.f32.mrf.mxu0
        %v1512 = vadd.f32 0.0, %v1511
        %1513 = vdwg.mxu0
        %v1514 = vadd.f32 %v1357, %v1419
        %v1515 = vadd.f32 %v1358, %v1422
        %v1516 = vadd.f32 %v1359, %v1425
        %v1517 = vadd.f32 %v1360, %v1428
        %v1518 = vadd.f32 %v1361, %v1431
        %v1519 = vadd.f32 %v1362, %v1434
        %v1520 = vadd.f32 %v1363, %v1437
        %v1521 = vadd.f32 %v1364, %v1440
        %v1522 = vadd.f32 %v1365, %v1443
        %v1523 = vadd.f32 %v1366, %v1446
        %v1524 = vadd.f32 %v1367, %v1449
        %v1525 = vadd.f32 %v1368, %v1452
        %v1526 = vadd.f32 %v1369, %v1455
        %v1527 = vadd.f32 %v1370, %v1458
        %v1528 = vadd.f32 %v1371, %v1461
        %v1529 = vadd.f32 %v1372, %v1464
        %v1530 = vadd.f32 %v1373, %v1467
        %v1531 = vadd.f32 %v1374, %v1470
        %v1532 = vadd.f32 %v1375, %v1473
        %v1533 = vadd.f32 %v1376, %v1476
        %v1534 = vadd.f32 %v1377, %v1479
        %v1535 = vadd.f32 %v1378, %v1482
        %v1536 = vadd.f32 %v1379, %v1485
        %v1537 = vadd.f32 %v1380, %v1488
        %v1538 = vadd.f32 %v1381, %v1491
        %v1539 = vadd.f32 %v1382, %v1494
        %v1540 = vadd.f32 %v1383, %v1497
        %v1541 = vadd.f32 %v1384, %v1500
        %v1542 = vadd.f32 %v1385, %v1503
        %v1543 = vadd.f32 %v1386, %v1506
        %v1544 = vadd.f32 %v1387, %v1509
        %v1545 = vadd.f32 %v1388, %v1512
        %1546 = vst.msk [vmem:[#allocation2] sm:$0xff] %vm755, %v1514
        %1547 = vst.msk [vmem:[#allocation2 + $0x8] sm:$0xff] %vm755, %v1515
        %1548 = vst.msk [vmem:[#allocation2 + $0x10] sm:$0xff] %vm755, %v1516
        %1549 = vst.msk [vmem:[#allocation2 + $0x18] sm:$0xff] %vm755, %v1517
        %1550 = vst.msk [vmem:[#allocation2 + $0x20] sm:$0xff] %vm755, %v1518
        %1551 = vst.msk [vmem:[#allocation2 + $0x28] sm:$0xff] %vm755, %v1519
        %1552 = vst.msk [vmem:[#allocation2 + $0x30] sm:$0xff] %vm755, %v1520
        %1553 = vst.msk [vmem:[#allocation2 + $0x38] sm:$0xff] %vm755, %v1521
        %1554 = vst.msk [vmem:[#allocation2 + $0x40] sm:$0xff] %vm755, %v1522
        %1555 = vst.msk [vmem:[#allocation2 + $0x48] sm:$0xff] %vm755, %v1523
        %1556 = vst.msk [vmem:[#allocation2 + $0x50] sm:$0xff] %vm755, %v1524
        %1557 = vst.msk [vmem:[#allocation2 + $0x58] sm:$0xff] %vm755, %v1525
        %1558 = vst.msk [vmem:[#allocation2 + $0x60] sm:$0xff] %vm755, %v1526
        %1559 = vst.msk [vmem:[#allocation2 + $0x68] sm:$0xff] %vm755, %v1527
        %1560 = vst.msk [vmem:[#allocation2 + $0x70] sm:$0xff] %vm755, %v1528
        %1561 = vst.msk [vmem:[#allocation2 + $0x78] sm:$0xff] %vm755, %v1529
        %1562 = vst.msk [vmem:[#allocation2 + $0x80] sm:$0xff] %vm755, %v1530
        %1563 = vst.msk [vmem:[#allocation2 + $0x88] sm:$0xff] %vm755, %v1531
        %1564 = vst.msk [vmem:[#allocation2 + $0x90] sm:$0xff] %vm755, %v1532
        %1565 = vst.msk [vmem:[#allocation2 + $0x98] sm:$0xff] %vm755, %v1533
        %1566 = vst.msk [vmem:[#allocation2 + $0xa0] sm:$0xff] %vm755, %v1534
        %1567 = vst.msk [vmem:[#allocation2 + $0xa8] sm:$0xff] %vm755, %v1535
        %1568 = vst.msk [vmem:[#allocation2 + $0xb0] sm:$0xff] %vm755, %v1536
        %1569 = vst.msk [vmem:[#allocation2 + $0xb8] sm:$0xff] %vm755, %v1537
        %1570 = vst.msk [vmem:[#allocation2 + $0xc0] sm:$0xff] %vm755, %v1538
        %1571 = vst.msk [vmem:[#allocation2 + $0xc8] sm:$0xff] %vm755, %v1539
        %1572 = vst.msk [vmem:[#allocation2 + $0xd0] sm:$0xff] %vm755, %v1540
        %1573 = vst.msk [vmem:[#allocation2 + $0xd8] sm:$0xff] %vm755, %v1541
        %1574 = vst.msk [vmem:[#allocation2 + $0xe0] sm:$0xff] %vm755, %v1542
        %1575 = vst.msk [vmem:[#allocation2 + $0xe8] sm:$0xff] %vm755, %v1543
        %1576 = vst.msk [vmem:[#allocation2 + $0xf0] sm:$0xff] %vm755, %v1544
        %1577 = vst.msk [vmem:[#allocation2 + $0xf8] sm:$0xff] %vm755, %v1545
        %v1578 = vld [vmem:[#allocation2] sm:$0xff]
        %v1579 = vld [vmem:[#allocation2 + $0x8] sm:$0xff]
        %v1580 = vld [vmem:[#allocation2 + $0x10] sm:$0xff]
        %v1581 = vld [vmem:[#allocation2 + $0x18] sm:$0xff]
        %v1582 = vld [vmem:[#allocation2 + $0x20] sm:$0xff]
        %v1583 = vld [vmem:[#allocation2 + $0x28] sm:$0xff]
        %v1584 = vld [vmem:[#allocation2 + $0x30] sm:$0xff]
        %v1585 = vld [vmem:[#allocation2 + $0x38] sm:$0xff]
        %v1586 = vld [vmem:[#allocation2 + $0x40] sm:$0xff]
        %v1587 = vld [vmem:[#allocation2 + $0x48] sm:$0xff]
        %v1588 = vld [vmem:[#allocation2 + $0x50] sm:$0xff]
        %v1589 = vld [vmem:[#allocation2 + $0x58] sm:$0xff]
        %v1590 = vld [vmem:[#allocation2 + $0x60] sm:$0xff]
        %v1591 = vld [vmem:[#allocation2 + $0x68] sm:$0xff]
        %v1592 = vld [vmem:[#allocation2 + $0x70] sm:$0xff]
        %v1593 = vld [vmem:[#allocation2 + $0x78] sm:$0xff]
        %v1594 = vld [vmem:[#allocation2 + $0x80] sm:$0xff]
        %v1595 = vld [vmem:[#allocation2 + $0x88] sm:$0xff]
        %v1596 = vld [vmem:[#allocation2 + $0x90] sm:$0xff]
        %v1597 = vld [vmem:[#allocation2 + $0x98] sm:$0xff]
        %v1598 = vld [vmem:[#allocation2 + $0xa0] sm:$0xff]
        %v1599 = vld [vmem:[#allocation2 + $0xa8] sm:$0xff]
        %v1600 = vld [vmem:[#allocation2 + $0xb0] sm:$0xff]
        %v1601 = vld [vmem:[#allocation2 + $0xb8] sm:$0xff]
        %v1602 = vld [vmem:[#allocation2 + $0xc0] sm:$0xff]
        %v1603 = vld [vmem:[#allocation2 + $0xc8] sm:$0xff]
        %v1604 = vld [vmem:[#allocation2 + $0xd0] sm:$0xff]
        %v1605 = vld [vmem:[#allocation2 + $0xd8] sm:$0xff]
        %v1606 = vld [vmem:[#allocation2 + $0xe0] sm:$0xff]
        %v1607 = vld [vmem:[#allocation2 + $0xe8] sm:$0xff]
        %v1608 = vld [vmem:[#allocation2 + $0xf0] sm:$0xff]
        %v1609 = vld [vmem:[#allocation2 + $0xf8] sm:$0xff]
        %1610 = vst.msk [vmem:[%s207] sm:$0xff] %vm755, %v1578
        %1611 = vst.msk [vmem:[%s207 + $0x8] sm:$0xff] %vm755, %v1579
        %1612 = vst.msk [vmem:[%s207 + $0x10] sm:$0xff] %vm755, %v1580
        %1613 = vst.msk [vmem:[%s207 + $0x18] sm:$0xff] %vm755, %v1581
        %1614 = vst.msk [vmem:[%s207 + $0x20] sm:$0xff] %vm755, %v1582
        %1615 = vst.msk [vmem:[%s207 + $0x28] sm:$0xff] %vm755, %v1583
        %1616 = vst.msk [vmem:[%s207 + $0x30] sm:$0xff] %vm755, %v1584
        %1617 = vst.msk [vmem:[%s207 + $0x38] sm:$0xff] %vm755, %v1585
        %1618 = vst.msk [vmem:[%s207 + $0x40] sm:$0xff] %vm755, %v1586
        %1619 = vst.msk [vmem:[%s207 + $0x48] sm:$0xff] %vm755, %v1587
        %1620 = vst.msk [vmem:[%s207 + $0x50] sm:$0xff] %vm755, %v1588
        %1621 = vst.msk [vmem:[%s207 + $0x58] sm:$0xff] %vm755, %v1589
        %1622 = vst.msk [vmem:[%s207 + $0x60] sm:$0xff] %vm755, %v1590
        %1623 = vst.msk [vmem:[%s207 + $0x68] sm:$0xff] %vm755, %v1591
        %1624 = vst.msk [vmem:[%s207 + $0x70] sm:$0xff] %vm755, %v1592
        %1625 = vst.msk [vmem:[%s207 + $0x78] sm:$0xff] %vm755, %v1593
        %1626 = vst.msk [vmem:[%s207 + $0x80] sm:$0xff] %vm755, %v1594
        %1627 = vst.msk [vmem:[%s207 + $0x88] sm:$0xff] %vm755, %v1595
        %1628 = vst.msk [vmem:[%s207 + $0x90] sm:$0xff] %vm755, %v1596
        %1629 = vst.msk [vmem:[%s207 + $0x98] sm:$0xff] %vm755, %v1597
        %1630 = vst.msk [vmem:[%s207 + $0xa0] sm:$0xff] %vm755, %v1598
        %1631 = vst.msk [vmem:[%s207 + $0xa8] sm:$0xff] %vm755, %v1599
        %1632 = vst.msk [vmem:[%s207 + $0xb0] sm:$0xff] %vm755, %v1600
        %1633 = vst.msk [vmem:[%s207 + $0xb8] sm:$0xff] %vm755, %v1601
        %1634 = vst.msk [vmem:[%s207 + $0xc0] sm:$0xff] %vm755, %v1602
        %1635 = vst.msk [vmem:[%s207 + $0xc8] sm:$0xff] %vm755, %v1603
        %1636 = vst.msk [vmem:[%s207 + $0xd0] sm:$0xff] %vm755, %v1604
        %1637 = vst.msk [vmem:[%s207 + $0xd8] sm:$0xff] %vm755, %v1605
        %1638 = vst.msk [vmem:[%s207 + $0xe0] sm:$0xff] %vm755, %v1606
        %1639 = vst.msk [vmem:[%s207 + $0xe8] sm:$0xff] %vm755, %v1607
        %1640 = vst.msk [vmem:[%s207 + $0xf0] sm:$0xff] %vm755, %v1608
        %1641 = vst.msk [vmem:[%s207 + $0xf8] sm:$0xff] %vm755, %v1609
        %v1642 = vsel %vm755, %v1578, 0.0
        %v1643 = vsel %vm755, %v1579, 0.0
        %v1644 = vadd.f32 %v1642, %v1643
        %v1645 = vsel %vm755, %v1580, 0.0
        %v1646 = vadd.f32 %v1644, %v1645
        %v1647 = vsel %vm755, %v1581, 0.0
        %v1648 = vadd.f32 %v1646, %v1647
        %v1649 = vsel %vm755, %v1582, 0.0
        %v1650 = vadd.f32 %v1648, %v1649
        %v1651 = vsel %vm755, %v1583, 0.0
        %v1652 = vadd.f32 %v1650, %v1651
        %v1653 = vsel %vm755, %v1584, 0.0
        %v1654 = vadd.f32 %v1652, %v1653
        %v1655 = vsel %vm755, %v1585, 0.0
        %v1656 = vadd.f32 %v1654, %v1655
        %v1657 = vsel %vm755, %v1586, 0.0
        %v1658 = vadd.f32 %v1656, %v1657
        %v1659 = vsel %vm755, %v1587, 0.0
        %v1660 = vadd.f32 %v1658, %v1659
        %v1661 = vsel %vm755, %v1588, 0.0
        %v1662 = vadd.f32 %v1660, %v1661
        %v1663 = vsel %vm755, %v1589, 0.0
        %v1664 = vadd.f32 %v1662, %v1663
        %v1665 = vsel %vm755, %v1590, 0.0
        %v1666 = vadd.f32 %v1664, %v1665
        %v1667 = vsel %vm755, %v1591, 0.0
        %v1668 = vadd.f32 %v1666, %v1667
        %v1669 = vsel %vm755, %v1592, 0.0
        %v1670 = vadd.f32 %v1668, %v1669
        %v1671 = vsel %vm755, %v1593, 0.0
        %v1672 = vadd.f32 %v1670, %v1671
        %v1673 = vsel %vm755, %v1594, 0.0
        %v1674 = vadd.f32 %v1672, %v1673
        %v1675 = vsel %vm755, %v1595, 0.0
        %v1676 = vadd.f32 %v1674, %v1675
        %v1677 = vsel %vm755, %v1596, 0.0
        %v1678 = vadd.f32 %v1676, %v1677
        %v1679 = vsel %vm755, %v1597, 0.0
        %v1680 = vadd.f32 %v1678, %v1679
        %v1681 = vsel %vm755, %v1598, 0.0
        %v1682 = vadd.f32 %v1680, %v1681
        %v1683 = vsel %vm755, %v1599, 0.0
        %v1684 = vadd.f32 %v1682, %v1683
        %v1685 = vsel %vm755, %v1600, 0.0
        %v1686 = vadd.f32 %v1684, %v1685
        %v1687 = vsel %vm755, %v1601, 0.0
        %v1688 = vadd.f32 %v1686, %v1687
        %v1689 = vsel %vm755, %v1602, 0.0
        %v1690 = vadd.f32 %v1688, %v1689
        %v1691 = vsel %vm755, %v1603, 0.0
        %v1692 = vadd.f32 %v1690, %v1691
        %v1693 = vsel %vm755, %v1604, 0.0
        %v1694 = vadd.f32 %v1692, %v1693
        %v1695 = vsel %vm755, %v1605, 0.0
        %v1696 = vadd.f32 %v1694, %v1695
        %v1697 = vsel %vm755, %v1606, 0.0
        %v1698 = vadd.f32 %v1696, %v1697
        %v1699 = vsel %vm755, %v1607, 0.0
        %v1700 = vadd.f32 %v1698, %v1699
        %v1701 = vsel %vm755, %v1608, 0.0
        %v1702 = vadd.f32 %v1700, %v1701
        %v1703 = vsel %vm755, %v1609, 0.0
        %v1704 = vadd.f32 %v1702, %v1703
        %v1705 = vrot.slane %v1704, 4
        %v1706 = vadd.f32 %v1704, %v1705
        %v1707 = vrot.slane %v1706, 2
        %v1708 = vadd.f32 %v1706, %v1707
        %v1709 = vrot.slane %v1708, 1
        %v1710 = vadd.f32 %v1708, %v1709
        %v1711 = vmul.f32 %v1578, %v1578
        %v1712 = vmul.f32 %v1579, %v1579
        %v1713 = vmul.f32 %v1580, %v1580
        %v1714 = vmul.f32 %v1581, %v1581
        %v1715 = vmul.f32 %v1582, %v1582
        %v1716 = vmul.f32 %v1583, %v1583
        %v1717 = vmul.f32 %v1584, %v1584
        %v1718 = vmul.f32 %v1585, %v1585
        %v1719 = vmul.f32 %v1586, %v1586
        %v1720 = vmul.f32 %v1587, %v1587
        %v1721 = vmul.f32 %v1588, %v1588
        %v1722 = vmul.f32 %v1589, %v1589
        %v1723 = vmul.f32 %v1590, %v1590
        %v1724 = vmul.f32 %v1591, %v1591
        %v1725 = vmul.f32 %v1592, %v1592
        %v1726 = vmul.f32 %v1593, %v1593
        %v1727 = vmul.f32 %v1594, %v1594
        %v1728 = vmul.f32 %v1595, %v1595
        %v1729 = vmul.f32 %v1596, %v1596
        %v1730 = vmul.f32 %v1597, %v1597
        %v1731 = vmul.f32 %v1598, %v1598
        %v1732 = vmul.f32 %v1599, %v1599
        %v1733 = vmul.f32 %v1600, %v1600
        %v1734 = vmul.f32 %v1601, %v1601
        %v1735 = vmul.f32 %v1602, %v1602
        %v1736 = vmul.f32 %v1603, %v1603
        %v1737 = vmul.f32 %v1604, %v1604
        %v1738 = vmul.f32 %v1605, %v1605
        %v1739 = vmul.f32 %v1606, %v1606
        %v1740 = vmul.f32 %v1607, %v1607
        %v1741 = vmul.f32 %v1608, %v1608
        %v1742 = vmul.f32 %v1609, %v1609
        %v1743 = vsel %vm755, %v1711, 0.0
        %v1744 = vsel %vm755, %v1712, 0.0
        %v1745 = vadd.f32 %v1743, %v1744
        %v1746 = vsel %vm755, %v1713, 0.0
        %v1747 = vadd.f32 %v1745, %v1746
        %v1748 = vsel %vm755, %v1714, 0.0
        %v1749 = vadd.f32 %v1747, %v1748
        %v1750 = vsel %vm755, %v1715, 0.0
        %v1751 = vadd.f32 %v1749, %v1750
        %v1752 = vsel %vm755, %v1716, 0.0
        %v1753 = vadd.f32 %v1751, %v1752
        %v1754 = vsel %vm755, %v1717, 0.0
        %v1755 = vadd.f32 %v1753, %v1754
        %v1756 = vsel %vm755, %v1718, 0.0
        %v1757 = vadd.f32 %v1755, %v1756
        %v1758 = vsel %vm755, %v1719, 0.0
        %v1759 = vadd.f32 %v1757, %v1758
        %v1760 = vsel %vm755, %v1720, 0.0
        %v1761 = vadd.f32 %v1759, %v1760
        %v1762 = vsel %vm755, %v1721, 0.0
        %v1763 = vadd.f32 %v1761, %v1762
        %v1764 = vsel %vm755, %v1722, 0.0
        %v1765 = vadd.f32 %v1763, %v1764
        %v1766 = vsel %vm755, %v1723, 0.0
        %v1767 = vadd.f32 %v1765, %v1766
        %v1768 = vsel %vm755, %v1724, 0.0
        %v1769 = vadd.f32 %v1767, %v1768
        %v1770 = vsel %vm755, %v1725, 0.0
        %v1771 = vadd.f32 %v1769, %v1770
        %v1772 = vsel %vm755, %v1726, 0.0
        %v1773 = vadd.f32 %v1771, %v1772
        %v1774 = vsel %vm755, %v1727, 0.0
        %v1775 = vadd.f32 %v1773, %v1774
        %v1776 = vsel %vm755, %v1728, 0.0
        %v1777 = vadd.f32 %v1775, %v1776
        %v1778 = vsel %vm755, %v1729, 0.0
        %v1779 = vadd.f32 %v1777, %v1778
        %v1780 = vsel %vm755, %v1730, 0.0
        %v1781 = vadd.f32 %v1779, %v1780
        %v1782 = vsel %vm755, %v1731, 0.0
        %v1783 = vadd.f32 %v1781, %v1782
        %v1784 = vsel %vm755, %v1732, 0.0
        %v1785 = vadd.f32 %v1783, %v1784
        %v1786 = vsel %vm755, %v1733, 0.0
        %v1787 = vadd.f32 %v1785, %v1786
        %v1788 = vsel %vm755, %v1734, 0.0
        %v1789 = vadd.f32 %v1787, %v1788
        %v1790 = vsel %vm755, %v1735, 0.0
        %v1791 = vadd.f32 %v1789, %v1790
        %v1792 = vsel %vm755, %v1736, 0.0
        %v1793 = vadd.f32 %v1791, %v1792
        %v1794 = vsel %vm755, %v1737, 0.0
        %v1795 = vadd.f32 %v1793, %v1794
        %v1796 = vsel %vm755, %v1738, 0.0
        %v1797 = vadd.f32 %v1795, %v1796
        %v1798 = vsel %vm755, %v1739, 0.0
        %v1799 = vadd.f32 %v1797, %v1798
        %v1800 = vsel %vm755, %v1740, 0.0
        %v1801 = vadd.f32 %v1799, %v1800
        %v1802 = vsel %vm755, %v1741, 0.0
        %v1803 = vadd.f32 %v1801, %v1802
        %v1804 = vsel %vm755, %v1742, 0.0
        %v1805 = vadd.f32 %v1803, %v1804
        %v1806 = vrot.slane %v1805, 4
        %v1807 = vadd.f32 %v1805, %v1806
        %v1808 = vrot.slane %v1807, 2
        %v1809 = vadd.f32 %v1807, %v1808
        %v1810 = vrot.slane %v1809, 1
        %v1811 = vadd.f32 %v1809, %v1810
        %vm1812 = vcmask 1040384
        %v1813 = vsel %vm1812, %v1710, %v1811
        %vm1814 = vcmask 58368
        %1815 = vst.msk [vmem:[%s192] sm:$0x3] %vm1814, %v1813
        %s1816 = smul.u32 16, %s23
        %p1817 = scmp.lt.s32.totalorder %s22, 1
        %s1818 = scalar_select %p1817, %s22, 1
        %p1819 = scmp.lt.s32.totalorder %s1816, 15
        %s1820 = scalar_select %p1819, %s1816, 15
        %s1821 = smul.addr %s1820, 2
        %s1822 = smul.addr %s1818, 32
        %s1823 = sadd.s32 %s1821, %s1822
        %s1824 = smul.addr %s1823, 8
        %s1825 = scalar_lea.vmem %s2, %s1824
        %s1826 = sand.u32 %s115, 1
        %s1827 = scalar_lea.sflag [#allocation4], %s1826
        %s1828 = sand.u32 %s115, 1
        %s1829 = smul.addr %s1828, 2
        %s1830 = scalar_lea.vmem [#allocation3], %s1829
        // Predicated region
        $region29: #{tpu_custom_call.1} parent=27 // pred_check
          %p1831 = pneg %p97
        $region30: #{tpu_custom_call.1} parent=27 // pred_check_branch
          %1833 = sbr.rel (%p1831) target = $region32
        $region31: #{tpu_custom_call.1} parent=27 // pred_region
          %s1834 = smul.u32 16, %s23
        $region32: #{tpu_custom_call.1} parent=27 // pred_fallthru
          _
        // Predicated region
        $region33: #{tpu_custom_call.1} parent=27 // pred_check
          %p1835 = pneg %p125
        $region34: #{tpu_custom_call.1} parent=27 // pred_check_branch
          %1837 = sbr.rel (%p1835) target = $region36
        $region35: #{tpu_custom_call.1} parent=27 // pred_region
          %1839 = vsyncadd %s1827, 0
          %s1840 = sadd.s32 %s23, %s22
          %s1841 = smul.addr %s1840, 2
          %s1842 = scalar_lea.hbm %s3, %s1841
          %s1844 = sshll.u32 %s1830, 4
          %s1845 = int_to_ptr.vmem [resolvable:$true] %s1844
          %s1846 = sshll.u32 %s1842, 4
          %s1847 = int_to_ptr.hbm [resolvable:$true] %s1846
          %1849 = dma.vmem_to_hbm [thread:$0]  %s1845, 32, %s1847, %s1827
        $region36: #{tpu_custom_call.1} parent=27 // pred_fallthru
          _
      $region28: #{tpu_custom_call.1} parent=5 // pred_fallthru
        _
      %p1850 = scmp.le.s32.totalorder 2, %s13
      // Predicated region
      $region37: #{tpu_custom_call.1} parent=5 // pred_check
        %p1851 = pneg %p1850
      $region38: #{tpu_custom_call.1} parent=5 // pred_check_branch
        %1853 = sbr.rel (%p1851) target = $region40
      $region39: #{tpu_custom_call.1} parent=5 // pred_region
        %s1854 = ssub.s32 %s13, 2
        // Predicated region
        $region41: #{tpu_custom_call.1} parent=39 // pred_check
          %p1855 = pneg %p103
        $region42: #{tpu_custom_call.1} parent=39 // pred_check_branch
          %1857 = sbr.rel (%p1855) target = $region44
        $region43: #{tpu_custom_call.1} parent=39 // pred_region
          %s1858 = smul.u32 16, %s25
          %p1859 = scmp.lt.s32.totalorder %s24, 1
          %s1860 = scalar_select %p1859, %s24, 1
          %p1861 = scmp.lt.s32.totalorder %s1858, 15
          %s1862 = scalar_select %p1861, %s1858, 15
          %s1863 = smul.addr %s1862, 2
          %s1864 = smul.addr %s1860, 32
          %s1865 = sadd.s32 %s1863, %s1864
          %s1866 = smul.addr %s1865, 8
          %s1867 = scalar_lea.vmem %s2, %s1866
        $region44: #{tpu_custom_call.1} parent=39 // pred_fallthru
          _
        // Predicated region
        $region45: #{tpu_custom_call.1} parent=39 // pred_check
          %p1868 = pneg %p131
        $region46: #{tpu_custom_call.1} parent=39 // pred_check_branch
          %1870 = sbr.rel (%p1868) target = $region48
        $region47: #{tpu_custom_call.1} parent=39 // pred_region
          %s1871 = sand.u32 %s116, 1
          %s1872 = scalar_lea.sflag [#allocation4], %s1871
          %s1873 = sand.u32 %s116, 1
          %s1874 = smul.addr %s1873, 2
          %s1875 = scalar_lea.vmem [#allocation3], %s1874
          %1877 = dma.done %s1872, 32
        $region48: #{tpu_custom_call.1} parent=39 // pred_fallthru
          _
      $region40: #{tpu_custom_call.1} parent=5 // pred_fallthru
        _
    $region6: #{tpu_custom_call.1} parent=1 // loop_footer
      %s17 = sadd.s32 1, %s13
    $region7: #{tpu_custom_call.1} parent=1 // loop_footer_branch
      %12 = sbr.rel target = $region3
    $region8: #{tpu_custom_call.1} parent=1 // loop_exit
      _
    %1878 = vsyncpa [#allocation4], 1
    %s1879 = scalar_lea.sflag [#allocation4], 1
    %1880 = vsyncpa %s1879, 1

</llo_original>
